<compile_context>
chip_gen: v7x
topology: tpu7x:2x2x1
jax: 0.10.0
libtpu: 0.0.40
codegen_flags: <defaults>
</compile_context>

<pallas_src>
import jax
import jax.numpy as jnp
from jax import lax
from jax.experimental import pallas as pl
from jax.experimental.pallas import tpu as pltpu

INPUT_DIM = 32      # synthetic choice (undefined constant in the reference)
OUTPUT_DIM = 10     # synthetic choice (undefined constant in the reference)
HIDDEN = (50, 100, 200, 300)

# Lane-aligned (padded) layer widths.
PAD_HIDDEN = (128, 128, 256, 384)
OUT_PAD = 128
PAD_IN = (INPUT_DIM,) + PAD_HIDDEN              # (32, 128, 128, 256, 384)
PAD_OUT = PAD_HIDDEN + (OUT_PAD,)               # (128, 128, 256, 384, 128)
ROW_OFF = tuple(sum(PAD_IN[:i]) for i in range(len(PAD_IN)))   # (0,32,160,288,544)
TOTAL_ROWS = sum(PAD_IN)                        # 928  (multiple of 16 -> bf16 tiles ok)
MAX_COL = max(PAD_OUT)                          # 384
NUM_LAYERS = len(PAD_IN)                        # 5
NEG_BIG = -1e30


def _round_up(x, m):
    return ((x + m - 1) // m) * m


def _mlp_kernel(x_ref, wp_ref, bp_ref, alpha_ref, o_ref):
    # Hoist PReLU slopes out of the layer chain (single SMEM read each).
    alphas = [alpha_ref[i] for i in range(len(HIDDEN))]

    h = x_ref[...]                                        # (TILE_B, INPUT_DIM) f32
    for i in range(NUM_LAYERS):
        r0, ri, ro = ROW_OFF[i], PAD_IN[i], PAD_OUT[i]
        w = wp_ref[r0:r0 + ri, 0:ro]                      # bf16, static slice
        b = bp_ref[i:i + 1, 0:ro]                         # f32 (1, ro)
        h = jnp.dot(h.astype(jnp.bfloat16), w,
                    preferred_element_type=jnp.float32) + b
        if i < NUM_LAYERS - 1:
            a = alphas[i]
            h = jnp.where(h >= 0.0, h, a * h)             # PReLU (num_parameters=1)

    # Softmax over the real OUTPUT_DIM lanes; padded lanes masked out.
    col = lax.broadcasted_iota(jnp.int32, h.shape, 1)
    logits = jnp.where(col < OUTPUT_DIM, h, NEG_BIG)
    m = jnp.max(logits, axis=-1, keepdims=True)
    e = jnp.exp(logits - m)                               # padded lanes -> 0
    s = jnp.sum(e, axis=-1, keepdims=True)
    r = pl.reciprocal(s, approx=True)                     # EUP vrcp
    r = r * (2.0 - s * r)                                 # one Newton step -> ~exact
    o_ref[...] = e * r                                    # lane-dense (TILE_B, 128) store


def network_forward(x, wp, bp, alphas, *, tile_b=None):
    """x: (B, INPUT_DIM) f32. wp: (TOTAL_ROWS, MAX_COL) bf16 packed weights.
    bp: (8, MAX_COL) f32 packed biases. alphas: (4,) f32 PReLU slopes."""
    B = x.shape[0]
    if tile_b is None:
        # Large tiles amortize the 5-matmul chain; cap keeps v7x (64 MiB VMEM) safe.
        tile_b = min(512, _round_up(B, 8))
    Bp = _round_up(B, tile_b)
    if Bp != B:
        x = jnp.pad(x, ((0, Bp - B), (0, 0)))

    grid = (Bp // tile_b,)
    out = pl.pallas_call(
        _mlp_kernel,
        out_shape=jax.ShapeDtypeStruct((Bp, OUT_PAD), jnp.float32),
        grid=grid,
        in_specs=[
            pl.BlockSpec((tile_b, INPUT_DIM), lambda i: (i, 0)),        # x tile
            pl.BlockSpec((TOTAL_ROWS, MAX_COL), lambda i: (0, 0)),      # weights (resident)
            pl.BlockSpec((8, MAX_COL), lambda i: (0, 0)),               # biases (resident)
            pl.BlockSpec(memory_space=pltpu.MemorySpace.SMEM),          # PReLU alphas
        ],
        out_specs=pl.BlockSpec((tile_b, OUT_PAD), lambda i: (i, 0)),
        compiler_params=pltpu.CompilerParams(
            dimension_semantics=("parallel",)),                         # v7x: 2 TCs
    )(x, wp, bp, alphas)
    return out[:B, :OUTPUT_DIM]


def init_params(key):
    """Deterministic synthetic init (PyTorch-Linear-like uniform fan-in scaling)."""
    dims = (INPUT_DIM,) + HIDDEN + (OUTPUT_DIM,)
    params = []
    for i in range(len(dims) - 1):
        fan_in, fan_out = dims[i], dims[i + 1]
        key, kw, kb = jax.random.split(key, 3)
        bound = 1.0 / (fan_in ** 0.5)
        w = jax.random.uniform(kw, (fan_in, fan_out), jnp.float32, -bound, bound)
        b = jax.random.uniform(kb, (1, fan_out), jnp.float32, -bound, bound)
        params.append((w, b))
    alphas = jnp.full((len(HIDDEN),), 0.25, dtype=jnp.float32)  # nn.PReLU() default
    return params, alphas


def pack_params(params):
    """Zero-pad each layer to lane-aligned widths and pack into one weight buffer
    (bf16) and one bias buffer (f32).  Padded rows/cols are zero, so the padded
    computation is exactly equal to the original one."""
    wp = jnp.zeros((TOTAL_ROWS, MAX_COL), jnp.float32)
    bp = jnp.zeros((8, MAX_COL), jnp.float32)
    for i, (w, b) in enumerate(params):
        r_in, r_out = w.shape
        wp = wp.at[ROW_OFF[i]:ROW_OFF[i] + r_in, :r_out].set(w)
        bp = bp.at[i, :r_out].set(b.reshape(-1))
    return wp.astype(jnp.bfloat16), bp


def reference_forward(x, params, alphas):
    """Pure-JAX reference of the same forward (bf16 weights, f32 accumulation)."""
    h = x
    for i, (w, b) in enumerate(params):
        h = jnp.dot(h.astype(jnp.bfloat16), w.astype(jnp.bfloat16),
                    preferred_element_type=jnp.float32) + b
        if i < len(params) - 1:
            h = jnp.where(h >= 0.0, h, alphas[i] * h)
    return jax.nn.softmax(h, axis=-1)


if __name__ == "__main__":
    key = jax.random.PRNGKey(0)
    key, kx = jax.random.split(key)

    B = 512
    x = jax.random.normal(kx, (B, INPUT_DIM), dtype=jnp.float32)

    params, alphas = init_params(key)
    wp, bp = pack_params(params)

    out = network_forward(x, wp, bp, alphas, tile_b=128)   # grid of 4 batch tiles
    out = jax.block_until_ready(out)

    ref = reference_forward(x, params, alphas)
    assert out.shape == (B, OUTPUT_DIM)
    assert jnp.allclose(jnp.sum(out, axis=-1), 1.0, atol=1e-4)
    assert jnp.allclose(out, ref, atol=1e-4, rtol=1e-4)

    print("KERNEL_OK")
</pallas_src>

<mosaic_0001>
module attributes {stable_mosaic.version = 11 : i64} {
  func.func @_mlp_kernel(%arg0: i32, %arg1: memref<128x32xf32, #tpu.memory_space<vmem>>, %arg2: memref<928x384xbf16, #tpu.memory_space<vmem>>, %arg3: memref<8x384xf32, #tpu.memory_space<vmem>>, %arg4: memref<4xf32, #tpu.memory_space<smem>>, %arg5: memref<128x128xf32, #tpu.memory_space<vmem>>) attributes {dimension_semantics = [#tpu.dimension_semantics<parallel>], iteration_bounds = array<i64: 4>, scalar_prefetch = 0 : i64, scratch_operands = 0 : i64, tpu.core_type = #tpu.core_type<tc>, window_params = [{transform_indices = @transform_0, window_bounds = array<i64: 128, 32>}, {pipeline_mode = #tpu.pipeline_mode<synchronous>, transform_indices = @transform_1, window_bounds = array<i64: 928, 384>}, {pipeline_mode = #tpu.pipeline_mode<synchronous>, transform_indices = @transform_2, window_bounds = array<i64: 8, 384>}, {transform_indices = @transform_3, window_bounds = array<i64: 4>}, {transform_indices = @transform_4, window_bounds = array<i64: 128, 128>}]} {
    %c0 = arith.constant 0 : index
    %0 = memref.load %arg4[%c0] : memref<4xf32, #tpu.memory_space<smem>>
    %c1 = arith.constant 1 : index
    %1 = memref.load %arg4[%c1] : memref<4xf32, #tpu.memory_space<smem>>
    %c2 = arith.constant 2 : index
    %2 = memref.load %arg4[%c2] : memref<4xf32, #tpu.memory_space<smem>>
    %c3 = arith.constant 3 : index
    %3 = memref.load %arg4[%c3] : memref<4xf32, #tpu.memory_space<smem>>
    %c0_0 = arith.constant 0 : index
    %c0_1 = arith.constant 0 : index
    %4 = vector.load %arg1[%c0_0, %c0_1] : memref<128x32xf32, #tpu.memory_space<vmem>>, vector<128x32xf32>
    %c0_2 = arith.constant 0 : index
    %c0_3 = arith.constant 0 : index
    %5 = vector.load %arg2[%c0_2, %c0_3] : memref<928x384xbf16, #tpu.memory_space<vmem>>, vector<32x128xbf16>
    %c0_4 = arith.constant 0 : index
    %c0_5 = arith.constant 0 : index
    %6 = vector.load %arg3[%c0_4, %c0_5] : memref<8x384xf32, #tpu.memory_space<vmem>>, vector<1x128xf32>
    %7 = arith.truncf %4 : vector<128x32xf32> to vector<128x32xbf16>
    %cst = arith.constant dense<0.000000e+00> : vector<128x128xf32>
    %8 = tpu.matmul %7, %5, %cst {dimension_numbers = #tpu.dot_dimension_numbers<[1], [0], [0], [1], [0, 0, 1, 1], [], []>} : vector<128x32xbf16>, vector<32x128xbf16>, vector<128x128xf32> -> vector<128x128xf32>
    %9 = vector.broadcast %6 : vector<1x128xf32> to vector<128x128xf32>
    %10 = arith.addf %8, %9 : vector<128x128xf32>
    %cst_6 = arith.constant 0.000000e+00 : f32
    %11 = vector.broadcast %cst_6 : f32 to vector<128x128xf32>
    %12 = arith.cmpf oge, %10, %11 : vector<128x128xf32>
    %13 = vector.broadcast %0 : f32 to vector<128x128xf32>
    %14 = arith.mulf %13, %10 : vector<128x128xf32>
    %15 = arith.select %12, %10, %14 : vector<128x128xi1>, vector<128x128xf32>
    %c32 = arith.constant 32 : index
    %c0_7 = arith.constant 0 : index
    %16 = vector.load %arg2[%c32, %c0_7] : memref<928x384xbf16, #tpu.memory_space<vmem>>, vector<128x128xbf16>
    %c1_8 = arith.constant 1 : index
    %c0_9 = arith.constant 0 : index
    %17 = vector.load %arg3[%c1_8, %c0_9] : memref<8x384xf32, #tpu.memory_space<vmem>>, vector<1x128xf32>
    %18 = arith.truncf %15 : vector<128x128xf32> to vector<128x128xbf16>
    %cst_10 = arith.constant dense<0.000000e+00> : vector<128x128xf32>
    %19 = tpu.matmul %18, %16, %cst_10 {dimension_numbers = #tpu.dot_dimension_numbers<[1], [0], [0], [1], [0, 0, 1, 1], [], []>} : vector<128x128xbf16>, vector<128x128xbf16>, vector<128x128xf32> -> vector<128x128xf32>
    %20 = vector.broadcast %17 : vector<1x128xf32> to vector<128x128xf32>
    %21 = arith.addf %19, %20 : vector<128x128xf32>
    %cst_11 = arith.constant 0.000000e+00 : f32
    %22 = vector.broadcast %cst_11 : f32 to vector<128x128xf32>
    %23 = arith.cmpf oge, %21, %22 : vector<128x128xf32>
    %24 = vector.broadcast %1 : f32 to vector<128x128xf32>
    %25 = arith.mulf %24, %21 : vector<128x128xf32>
    %26 = arith.select %23, %21, %25 : vector<128x128xi1>, vector<128x128xf32>
    %c160 = arith.constant 160 : index
    %c0_12 = arith.constant 0 : index
    %27 = vector.load %arg2[%c160, %c0_12] : memref<928x384xbf16, #tpu.memory_space<vmem>>, vector<128x256xbf16>
    %c2_13 = arith.constant 2 : index
    %c0_14 = arith.constant 0 : index
    %28 = vector.load %arg3[%c2_13, %c0_14] : memref<8x384xf32, #tpu.memory_space<vmem>>, vector<1x256xf32>
    %29 = arith.truncf %26 : vector<128x128xf32> to vector<128x128xbf16>
    %cst_15 = arith.constant dense<0.000000e+00> : vector<128x256xf32>
    %30 = tpu.matmul %29, %27, %cst_15 {dimension_numbers = #tpu.dot_dimension_numbers<[1], [0], [0], [1], [0, 0, 1, 1], [], []>} : vector<128x128xbf16>, vector<128x256xbf16>, vector<128x256xf32> -> vector<128x256xf32>
    %31 = vector.broadcast %28 : vector<1x256xf32> to vector<128x256xf32>
    %32 = arith.addf %30, %31 : vector<128x256xf32>
    %cst_16 = arith.constant 0.000000e+00 : f32
    %33 = vector.broadcast %cst_16 : f32 to vector<128x256xf32>
    %34 = arith.cmpf oge, %32, %33 : vector<128x256xf32>
    %35 = vector.broadcast %2 : f32 to vector<128x256xf32>
    %36 = arith.mulf %35, %32 : vector<128x256xf32>
    %37 = arith.select %34, %32, %36 : vector<128x256xi1>, vector<128x256xf32>
    %c288 = arith.constant 288 : index
    %c0_17 = arith.constant 0 : index
    %38 = vector.load %arg2[%c288, %c0_17] : memref<928x384xbf16, #tpu.memory_space<vmem>>, vector<256x384xbf16>
    %c3_18 = arith.constant 3 : index
    %c0_19 = arith.constant 0 : index
    %39 = vector.load %arg3[%c3_18, %c0_19] : memref<8x384xf32, #tpu.memory_space<vmem>>, vector<1x384xf32>
    %40 = arith.truncf %37 : vector<128x256xf32> to vector<128x256xbf16>
    %cst_20 = arith.constant dense<0.000000e+00> : vector<128x384xf32>
    %41 = tpu.matmul %40, %38, %cst_20 {dimension_numbers = #tpu.dot_dimension_numbers<[1], [0], [0], [1], [0, 0, 1, 1], [], []>} : vector<128x256xbf16>, vector<256x384xbf16>, vector<128x384xf32> -> vector<128x384xf32>
    %42 = vector.broadcast %39 : vector<1x384xf32> to vector<128x384xf32>
    %43 = arith.addf %41, %42 : vector<128x384xf32>
    %cst_21 = arith.constant 0.000000e+00 : f32
    %44 = vector.broadcast %cst_21 : f32 to vector<128x384xf32>
    %45 = arith.cmpf oge, %43, %44 : vector<128x384xf32>
    %46 = vector.broadcast %3 : f32 to vector<128x384xf32>
    %47 = arith.mulf %46, %43 : vector<128x384xf32>
    %48 = arith.select %45, %43, %47 : vector<128x384xi1>, vector<128x384xf32>
    %c544 = arith.constant 544 : index
    %c0_22 = arith.constant 0 : index
    %49 = vector.load %arg2[%c544, %c0_22] : memref<928x384xbf16, #tpu.memory_space<vmem>>, vector<384x128xbf16>
    %c4 = arith.constant 4 : index
    %c0_23 = arith.constant 0 : index
    %50 = vector.load %arg3[%c4, %c0_23] : memref<8x384xf32, #tpu.memory_space<vmem>>, vector<1x128xf32>
    %51 = arith.truncf %48 : vector<128x384xf32> to vector<128x384xbf16>
    %cst_24 = arith.constant dense<0.000000e+00> : vector<128x128xf32>
    %52 = tpu.matmul %51, %49, %cst_24 {dimension_numbers = #tpu.dot_dimension_numbers<[1], [0], [0], [1], [0, 0, 1, 1], [], []>} : vector<128x384xbf16>, vector<384x128xbf16>, vector<128x128xf32> -> vector<128x128xf32>
    %53 = vector.broadcast %50 : vector<1x128xf32> to vector<128x128xf32>
    %54 = arith.addf %52, %53 : vector<128x128xf32>
    %55 = tpu.iota {dimensions = array<i32: 1>} : vector<128x128xi32>
    %c10_i32 = arith.constant 10 : i32
    %56 = vector.broadcast %c10_i32 : i32 to vector<128x128xi32>
    %57 = arith.cmpi slt, %55, %56 : vector<128x128xi32>
    %cst_25 = arith.constant -1.000000e+30 : f32
    %58 = vector.broadcast %cst_25 : f32 to vector<128x128xf32>
    %59 = arith.select %57, %54, %58 : vector<128x128xi1>, vector<128x128xf32>
    %cst_26 = arith.constant dense<0xFF800000> : vector<128xf32>
    %60 = vector.multi_reduction <maximumf>, %59, %cst_26 [1] : vector<128x128xf32> to vector<128xf32>
    %61 = vector.shape_cast %60 : vector<128xf32> to vector<128x1xf32>
    %62 = vector.broadcast %61 : vector<128x1xf32> to vector<128x128xf32>
    %63 = arith.subf %59, %62 : vector<128x128xf32>
    %64 = math.exp %63 : vector<128x128xf32>
    %cst_27 = arith.constant dense<0.000000e+00> : vector<128xf32>
    %65 = vector.multi_reduction <add>, %64, %cst_27 [1] : vector<128x128xf32> to vector<128xf32>
    %66 = vector.shape_cast %65 : vector<128xf32> to vector<128x1xf32>
    %67 = tpu.reciprocal %66 {approx = true} : vector<128x1xf32> -> vector<128x1xf32>
    %68 = arith.mulf %66, %67 : vector<128x1xf32>
    %cst_28 = arith.constant 2.000000e+00 : f32
    %69 = vector.broadcast %cst_28 : f32 to vector<128x1xf32>
    %70 = arith.subf %69, %68 : vector<128x1xf32>
    %71 = arith.mulf %67, %70 : vector<128x1xf32>
    %72 = vector.broadcast %71 : vector<128x1xf32> to vector<128x128xf32>
    %73 = arith.mulf %64, %72 : vector<128x128xf32>
    %c0_29 = arith.constant 0 : index
    %c0_30 = arith.constant 0 : index
    %74 = vector.load %arg5[%c0_29, %c0_30] : memref<128x128xf32, #tpu.memory_space<vmem>>, vector<128x128xf32>
    tpu.vector_store %arg5[%c0_29, %c0_30], %73 {strides = array<i32>} : memref<128x128xf32, #tpu.memory_space<vmem>>, vector<128x128xf32>,
    return
  }
  func.func @transform_0(%arg0: i32) -> (i32, i32) {
    %c0_i32 = arith.constant 0 : i32
    %c0_i32_0 = arith.constant 0 : i32
    return %arg0, %c0_i32 : i32, i32
  }
  func.func @transform_1(%arg0: i32) -> (i32, i32) {
    %c0_i32 = arith.constant 0 : i32
    %c0_i32_0 = arith.constant 0 : i32
    %c0_i32_1 = arith.constant 0 : i32
    return %c0_i32, %c0_i32_0 : i32, i32
  }
  func.func @transform_2(%arg0: i32) -> (i32, i32) {
    %c0_i32 = arith.constant 0 : i32
    %c0_i32_0 = arith.constant 0 : i32
    %c0_i32_1 = arith.constant 0 : i32
    return %c0_i32, %c0_i32_0 : i32, i32
  }
  func.func @transform_3(%arg0: i32) -> i32 {
    %c0_i32 = arith.constant 0 : i32
    %c0_i32_0 = arith.constant 0 : i32
    return %c0_i32 : i32
  }
  func.func @transform_4(%arg0: i32) -> (i32, i32) {
    %c0_i32 = arith.constant 0 : i32
    %c0_i32_0 = arith.constant 0 : i32
    return %arg0, %c0_i32 : i32, i32
  }
}

</mosaic_0001>

<llo_original>
// kernel: tpu_custom_call.1
$region0: #{tpu_custom_call.1}
  #allocation0 [shape = 'u32[]', space=smem, size = 0x4, offset = 0x4, fixed_abs, tag = 'smem constant byte address 0x4 - core index']
  #allocation1 [shape = 'u32[144,128]{1,0:T(1,128)}', space=vmem, size = 0x12000, scoped, tag = 'internal scratch']
  %s0 = inlined_call_operand.vmem [shape: f32[512,32], index: 0, kind: input, shape index: {}]
  %s1 = inlined_call_operand.hbm [shape: bf16[928,384], index: 1, kind: input, shape index: {}]
  %s2 = inlined_call_operand.vmem [shape: f32[8,384], index: 2, kind: input, shape index: {}]
  %s3 = inlined_call_operand.vmem [shape: f32[4], index: 3, kind: input, shape index: {}]
  %s4 = inlined_call_operand.hbm [shape: f32[512,128], index: 4, kind: output, shape index: {}]
  %s5 = sld [smem:[#allocation0]]
  $region57: #{tpu_custom_call.1} parent=0
    _
  %s7 = ssub.s32 1, %s5
  %s8 = scalar_select 0, %s7, %s5
  $region1: #{tpu_custom_call.1} parent=0
    #allocation2 [shape = 'u8[712704]{0}', space=vmem, size = 0xae000, scoped, tag = 'input window, operand 1, single buffered']
    #allocation3 [shape = 's32[2]{0}', space=sflag, size = 0x8, scoped, tag = 'scoped memory for tpu_custom_call.1']
    #allocation4 [shape = 's32[2]{0}', space=sflag, size = 0x8, scoped, tag = 'scoped memory for tpu_custom_call.1']
    #allocation5 [shape = 's32[2]{0}', space=sflag, size = 0x8, scoped, tag = 'scoped memory for tpu_custom_call.1']
    #allocation6 [shape = 'u8[512]{0}', space=smem, size = 0x200, scoped, tag = 'input window, operand 3, single buffered']
    #allocation7 [shape = 'u8[131072]{0}', space=vmem, size = 0x20000, scoped, tag = 'output window, operand 0']
    %9 = vsyncpa [#allocation3], 0
    %10 = vsyncpa [#allocation5], 0
    %11 = vsyncpa [#allocation4], 0
    %s12 = scalar_lea.sflag [#allocation4], 1
    %13 = vsyncpa %s12, 0
    loop: start=0, step=1, limit=6
    $region2: #{tpu_custom_call.1} parent=1 // loop_pre_header
      _
    $region3: #{tpu_custom_call.1} parent=1 // loop_header
      %s15 = sphi 0, %s19
      %p16 = scmp.ge.s32.totalorder %s15, 6
      %s25 = sphi 0, %s27
      %s28 = sphi 0, %s25
      %s29 = sphi 0, %s28
      %s45 = sphi 0, %s29
      %s49 = sphi 0, %s49
      %s51 = sphi 0, %s49
      %s52 = sphi 0, %s51
      %s66 = sphi 0, %s52
      %s70 = sphi 0, %s70
      %s72 = sphi 0, %s70
      %s73 = sphi 0, %s72
      %s87 = sphi 0, %s73
      %s91 = sphi 0, %s91
      %s93 = sphi 0, %s91
      %s94 = sphi 0, %s93
      %s108 = sphi 0, %s94
      %s114 = sphi 0, %s116
      %s117 = sphi 0, %s114
      %s118 = sphi 0, %s117
      %s134 = sphi 0, %s118
    $region4: #{tpu_custom_call.1} parent=1 // loop_header_branch
      %18 = sbr.rel (%p16) target = $region8
    $region5: #{tpu_custom_call.1} parent=1 // loop_body
      %s20 = ssub.s32 %s15, 1
      %s21 = ssub.s32 %s15, 2
      %s22 = sadd.s32 %s15, 1
      %s23 = ssub.s32 %s15, %s22
      %p24 = scmp.eq.s32.totalorder %s23, 0
      %s26 = sadd.s32 %s25, 1
      %s27 = scalar_select %p24, %s25, %s26
      %p30 = pneg %p24
      %p31 = scmp.eq.s32.totalorder %s15, 3
      %p32 = por %p30, %p31
      %p33 = scmp.ne.s32.totalorder %s25, %s28
      %p34 = scmp.eq.s32.totalorder %s15, 0
      %p35 = por %p33, %p34
      %p36 = scmp.ne.s32.totalorder %s25, %s28
      %p37 = scmp.eq.s32.totalorder %s20, 3
      %p38 = por %p36, %p37
      %p39 = scmp.ne.s32.totalorder %s28, %s29
      %p40 = scmp.eq.s32.totalorder %s20, 0
      %p41 = por %p39, %p40
      %p42 = scmp.ne.s32.totalorder %s28, %s29
      %p43 = scmp.eq.s32.totalorder %s21, 3
      %p44 = por %p42, %p43
      %p46 = scmp.ne.s32.totalorder %s29, %s45
      %p47 = scmp.eq.s32.totalorder %s21, 0
      %p48 = por %p46, %p47
      %s50 = sadd.s32 %s49, 1
      %p53 = scmp.eq.s32.totalorder %s15, 3
      %p54 = scmp.ne.s32.totalorder %s49, %s51
      %p55 = scmp.eq.s32.totalorder %s15, 0
      %p56 = por %p54, %p55
      %p57 = scmp.ne.s32.totalorder %s49, %s51
      %p58 = scmp.eq.s32.totalorder %s20, 3
      %p59 = por %p57, %p58
      %p60 = scmp.ne.s32.totalorder %s51, %s52
      %p61 = scmp.eq.s32.totalorder %s20, 0
      %p62 = por %p60, %p61
      %p63 = scmp.ne.s32.totalorder %s51, %s52
      %p64 = scmp.eq.s32.totalorder %s21, 3
      %p65 = por %p63, %p64
      %p67 = scmp.ne.s32.totalorder %s52, %s66
      %p68 = scmp.eq.s32.totalorder %s21, 0
      %p69 = por %p67, %p68
      %s71 = sadd.s32 %s70, 1
      %p74 = scmp.eq.s32.totalorder %s15, 3
      %p75 = scmp.ne.s32.totalorder %s70, %s72
      %p76 = scmp.eq.s32.totalorder %s15, 0
      %p77 = por %p75, %p76
      %p78 = scmp.ne.s32.totalorder %s70, %s72
      %p79 = scmp.eq.s32.totalorder %s20, 3
      %p80 = por %p78, %p79
      %p81 = scmp.ne.s32.totalorder %s72, %s73
      %p82 = scmp.eq.s32.totalorder %s20, 0
      %p83 = por %p81, %p82
      %p84 = scmp.ne.s32.totalorder %s72, %s73
      %p85 = scmp.eq.s32.totalorder %s21, 3
      %p86 = por %p84, %p85
      %p88 = scmp.ne.s32.totalorder %s73, %s87
      %p89 = scmp.eq.s32.totalorder %s21, 0
      %p90 = por %p88, %p89
      %s92 = sadd.s32 %s91, 1
      %p95 = scmp.eq.s32.totalorder %s15, 3
      %p96 = scmp.ne.s32.totalorder %s91, %s93
      %p97 = scmp.eq.s32.totalorder %s15, 0
      %p98 = por %p96, %p97
      %p99 = scmp.ne.s32.totalorder %s91, %s93
      %p100 = scmp.eq.s32.totalorder %s20, 3
      %p101 = por %p99, %p100
      %p102 = scmp.ne.s32.totalorder %s93, %s94
      %p103 = scmp.eq.s32.totalorder %s20, 0
      %p104 = por %p102, %p103
      %p105 = scmp.ne.s32.totalorder %s93, %s94
      %p106 = scmp.eq.s32.totalorder %s21, 3
      %p107 = por %p105, %p106
      %p109 = scmp.ne.s32.totalorder %s94, %s108
      %p110 = scmp.eq.s32.totalorder %s21, 0
      %p111 = por %p109, %p110
      %s112 = ssub.s32 %s15, %s22
      %p113 = scmp.eq.s32.totalorder %s112, 0
      %s115 = sadd.s32 %s114, 1
      %s116 = scalar_select %p113, %s114, %s115
      %p119 = pneg %p113
      %p120 = scmp.eq.s32.totalorder %s15, 3
      %p121 = por %p119, %p120
      %p122 = scmp.ne.s32.totalorder %s114, %s117
      %p123 = scmp.eq.s32.totalorder %s15, 0
      %p124 = por %p122, %p123
      %p125 = scmp.ne.s32.totalorder %s114, %s117
      %p126 = scmp.eq.s32.totalorder %s20, 3
      %p127 = por %p125, %p126
      %p128 = scmp.ne.s32.totalorder %s117, %s118
      %p129 = scmp.eq.s32.totalorder %s20, 0
      %p130 = por %p128, %p129
      %p131 = scmp.ne.s32.totalorder %s117, %s118
      %p132 = scmp.eq.s32.totalorder %s21, 3
      %p133 = por %p131, %p132
      %p135 = scmp.ne.s32.totalorder %s118, %s134
      %p136 = scmp.eq.s32.totalorder %s21, 0
      %p137 = por %p135, %p136
      %p138 = scmp.le.s32.totalorder 1, %s15
      %p139 = scmp.lt.s32.totalorder %s15, 5
      %p140 = pnand %p138, %p139
      %p141 = pneg %p140
      // Predicated region
      $region9: #{tpu_custom_call.1} parent=5 // pred_check
        _
      $region10: #{tpu_custom_call.1} parent=5 // pred_check_branch
        %143 = sbr.rel (%p140) target = $region12
      $region11: #{tpu_custom_call.1} parent=5 // pred_region
        %s144 = ssub.s32 %s15, 1
        // Predicated region
        $region13: #{tpu_custom_call.1} parent=11 // pred_check
          %p145 = pneg %p62
        $region14: #{tpu_custom_call.1} parent=11 // pred_check_branch
          %147 = sbr.rel (%p145) target = $region16
        $region15: #{tpu_custom_call.1} parent=11 // pred_region
          %s149 = ssub.s32 22272, 22272
          %150 = vsyncadd [#allocation3], %s149
          %s151 = sshll.u32 [#allocation2], 4
          %s152 = int_to_ptr.vmem [resolvable:$true] %s151
          %157 = dma.hbm_to_vmem [thread:$0]  %s1, 22272, %s152, [#allocation3], 192, 192, 12
        $region16: #{tpu_custom_call.1} parent=11 // pred_fallthru
          _
        // Predicated region
        $region17: #{tpu_custom_call.1} parent=11 // pred_check
          %p158 = pneg %p83
        $region18: #{tpu_custom_call.1} parent=11 // pred_check_branch
          %160 = sbr.rel (%p158) target = $region20
        $region19: #{tpu_custom_call.1} parent=11 // pred_region
          _
        $region20: #{tpu_custom_call.1} parent=11 // pred_fallthru
          _
        // Predicated region
        $region21: #{tpu_custom_call.1} parent=11 // pred_check
          %p161 = pneg %p104
        $region22: #{tpu_custom_call.1} parent=11 // pred_check_branch
          %163 = sbr.rel (%p161) target = $region24
        $region23: #{tpu_custom_call.1} parent=11 // pred_region
          %s165 = ssub.s32 16, 16
          %166 = vsyncadd [#allocation5], %s165
          %s168 = sshll.u32 %s3, 4
          %s169 = int_to_ptr.vmem [resolvable:$true] %s168
          %171 = dma.vmem_to_smem %s169, 16, [#allocation6], [#allocation5]
        $region24: #{tpu_custom_call.1} parent=11 // pred_fallthru
          _
      $region12: #{tpu_custom_call.1} parent=5 // pred_fallthru
        _
      %p172 = scmp.lt.s32.totalorder %s15, 4
      // Predicated region
      $region25: #{tpu_custom_call.1} parent=5 // pred_check
        %p173 = pneg %p172
      $region26: #{tpu_custom_call.1} parent=5 // pred_check_branch
        %175 = sbr.rel (%p173) target = $region28
      $region27: #{tpu_custom_call.1} parent=5 // pred_region
        // Predicated region
        $region29: #{tpu_custom_call.1} parent=27 // pred_check
          %p176 = pneg %p35
        $region30: #{tpu_custom_call.1} parent=27 // pred_check_branch
          %178 = sbr.rel (%p176) target = $region32
        $region31: #{tpu_custom_call.1} parent=27 // pred_region
          %s179 = smul.u32 16, %s15
          %p180 = scmp.lt.s32.totalorder %s179, 63
          %s181 = scalar_select %p180, %s179, 63
          %s182 = smul.addr %s181, 8
          %s183 = scalar_lea.vmem %s0, %s182
          %s184 = smul.u32 16, %s15
        $region32: #{tpu_custom_call.1} parent=27 // pred_fallthru
          _
      $region28: #{tpu_custom_call.1} parent=5 // pred_fallthru
        _
      %p185 = scmp.le.s32.totalorder 1, %s15
      %p186 = scmp.lt.s32.totalorder %s15, 5
      %p187 = pnand %p185, %p186
      %p188 = pneg %p187
      // Predicated region
      $region33: #{tpu_custom_call.1} parent=5 // pred_check
        _
      $region34: #{tpu_custom_call.1} parent=5 // pred_check_branch
        %190 = sbr.rel (%p187) target = $region36
      $region35: #{tpu_custom_call.1} parent=5 // pred_region
        %s191 = ssub.s32 %s15, 1
        // Predicated region
        $region37: #{tpu_custom_call.1} parent=35 // pred_check
          %p192 = pneg %p62
        $region38: #{tpu_custom_call.1} parent=35 // pred_check_branch
          %194 = sbr.rel (%p192) target = $region40
        $region39: #{tpu_custom_call.1} parent=35 // pred_region
          %195 = dma.done [#allocation3], 22272
        $region40: #{tpu_custom_call.1} parent=35 // pred_fallthru
          _
        // Predicated region
        $region41: #{tpu_custom_call.1} parent=35 // pred_check
          %p196 = pneg %p104
        $region42: #{tpu_custom_call.1} parent=35 // pred_check_branch
          %198 = sbr.rel (%p196) target = $region44
        $region43: #{tpu_custom_call.1} parent=35 // pred_region
          %199 = dma.done [#allocation5], 16
        $region44: #{tpu_custom_call.1} parent=35 // pred_fallthru
          _
        %200 = sfence
        %s201 = smul.u32 16, %s20
        %p202 = scmp.lt.s32.totalorder %s201, 63
        %s203 = scalar_select %p202, %s201, 63
        %s204 = smul.addr %s203, 8
        %s205 = scalar_lea.vmem %s0, %s204
        %p206 = pneg %p41
        %p207 = pneg %p38
        %p208 = pneg %p62
        %p209 = pneg %p59
        %p210 = pneg %p83
        %p211 = pneg %p80
        %p212 = pneg %p104
        %p213 = pneg %p101
        %p214 = pneg %p130
        %p215 = pneg %p127
        %s216 = sand.u32 %s117, 1
        %s217 = scalar_lea.sflag [#allocation4], %s216
        %s218 = sand.u32 %s117, 1
        %s219 = smul.addr %s218, 128
        %s220 = scalar_lea.vmem [#allocation7], %s219
        %s221 = smul.u32 16, %s20
        %p222 = scmp.lt.s32.totalorder %s221, 63
        %s223 = scalar_select %p222, %s221, 63
        %s224 = smul.addr %s223, 8
        %s225 = scalar_lea.vmem %s0, %s224
        %s226 = smul.u32 16, %s20
        %s227 = smul.u32 16, %s20
        %s229 = sld [smem:[#allocation6]]
        %s230 = sld [smem:[#allocation6 + $0x1]]
        %s231 = sld [smem:[#allocation6 + $0x2]]
        %s232 = sld [smem:[#allocation6 + $0x3]]
        %v233 = vld [vmem:[%s225] sm:$0xff]
        %v234 = vld [vmem:[%s225 + $0x8] sm:$0xff]
        %v235 = vld [vmem:[%s225 + $0x10] sm:$0xff]
        %v236 = vld [vmem:[%s225 + $0x18] sm:$0xff]
        %v237 = vld [vmem:[%s225 + $0x20] sm:$0xff]
        %v238 = vld [vmem:[%s225 + $0x28] sm:$0xff]
        %v239 = vld [vmem:[%s225 + $0x30] sm:$0xff]
        %v240 = vld [vmem:[%s225 + $0x38] sm:$0xff]
        %v241 = vld [vmem:[%s225 + $0x40] sm:$0xff]
        %v242 = vld [vmem:[%s225 + $0x48] sm:$0xff]
        %v243 = vld [vmem:[%s225 + $0x50] sm:$0xff]
        %v244 = vld [vmem:[%s225 + $0x58] sm:$0xff]
        %v245 = vld [vmem:[%s225 + $0x60] sm:$0xff]
        %v246 = vld [vmem:[%s225 + $0x68] sm:$0xff]
        %v247 = vld [vmem:[%s225 + $0x70] sm:$0xff]
        %v248 = vld [vmem:[%s225 + $0x78] sm:$0xff]
        %v249 = vld [vmem:[#allocation2] sm:$0xf]
        %v250 = vld [vmem:[#allocation2 + $0xc] sm:$0xf]
        %v251 = vld [vmem:[#allocation2 + $0x18] sm:$0xf]
        %v252 = vld [vmem:[#allocation2 + $0x24] sm:$0xf]
        %v253 = vld [vmem:[%s2] ss:$0 sm:$0xff]
        %v254 = vpack.c.bf16 %v234, %v233
        %v255 = vpack.c.bf16 %v236, %v235
        %v256 = vpack.c.bf16 %v238, %v237
        %v257 = vpack.c.bf16 %v240, %v239
        %v258 = vpack.c.bf16 %v242, %v241
        %v259 = vpack.c.bf16 %v244, %v243
        %v260 = vpack.c.bf16 %v246, %v245
        %v261 = vpack.c.bf16 %v248, %v247
        %v266 = vunpack.c.l.b16 %v249
        %v267 = vunpack.c.l.b16 %v250
        %v268 = vunpack.c.l.b16 %v251
        %v269 = vunpack.c.l.b16 %v252
        %v270 = vpack.c.b16 %v267, %v266
        %v271 = vpack.c.b16 %v269, %v268
        %vm274 = vcmask 261120
        %v276 = vsel %vm274, %v254, 0
        %v279 = vsel %vm274, %v255, 0
        %v282 = vsel %vm274, %v256, 0
        %v285 = vsel %vm274, %v257, 0
        %v288 = vsel %vm274, %v258, 0
        %v291 = vsel %vm274, %v259, 0
        %v294 = vsel %vm274, %v260, 0
        %v297 = vsel %vm274, %v261, 0
        %299 = vmatprep.subr.bf16.mxu0 0
        %300 = vmatpush1.bf16.msra.mxu0 %v270
        %301 = vmatprep.subr.bf16.mxu0 0
        %302 = vmatpush1.bf16.msra.mxu0 %v271
        %303 = vmatprep.subr.bf16.mxu0 0
        %304 = vmatpush1.bf16.msra.mxu0 0
        %305 = vmatprep.subr.bf16.mxu0 0
        %306 = vmatpush1.bf16.msra.mxu0 0
        %307 = vmatprep.subr.bf16.mxu0 0
        %308 = vmatpush1.bf16.msra.mxu0 0
        %309 = vmatprep.subr.bf16.mxu0 0
        %310 = vmatpush1.bf16.msra.mxu0 0
        %311 = vmatprep.subr.bf16.mxu0 0
        %312 = vmatpush1.bf16.msra.mxu0 0
        %313 = vmatprep.subr.bf16.mxu0 0
        %314 = vmatpush1.bf16.msra.mxu0 0
        %315 = vmatprep.subr.bf16.mxu0 0
        %316 = vmatpush1.bf16.msra.mxu0 0
        %317 = vmatprep.subr.bf16.mxu0 0
        %318 = vmatpush1.bf16.msra.mxu0 0
        %319 = vmatprep.subr.bf16.mxu0 0
        %320 = vmatpush1.bf16.msra.mxu0 0
        %321 = vmatprep.subr.bf16.mxu0 0
        %322 = vmatpush1.bf16.msra.mxu0 0
        %323 = vmatprep.subr.bf16.mxu0 0
        %324 = vmatpush1.bf16.msra.mxu0 0
        %325 = vmatprep.subr.bf16.mxu0 0
        %326 = vmatpush1.bf16.msra.mxu0 0
        %327 = vmatprep.subr.bf16.mxu0 0
        %328 = vmatpush1.bf16.msra.mxu0 0
        %329 = vmatprep.subr.bf16.mxu0 0
        %330 = vmatpush1.bf16.msra.mxu0 0
        %331 = vmatprep.mubr.bf16.mxu0 0
        %332 = vmatmul.mubr.bf16.gmra.mrb[0].mxu0 %v276
        %v333 = vpop.f32.mrb[0].mxu0
        %v334 = vadd.f32 %v253, %v333
        %v335 = vpop.f32.mrb[0].mxu0
        %v336 = vpop.f32.mrb[0].mxu0
        %v337 = vadd.f32 %v253, %v336
        %v338 = vpop.f32.mrb[0].mxu0
        %339 = vmatprep.mubr.bf16.mxu0 0
        %340 = vmatmul.mubr.bf16.gmra.mrb[0].mxu0 %v279
        %v341 = vpop.f32.mrb[0].mxu0
        %v342 = vadd.f32 %v253, %v341
        %v343 = vpop.f32.mrb[0].mxu0
        %v344 = vpop.f32.mrb[0].mxu0
        %v345 = vadd.f32 %v253, %v344
        %v346 = vpop.f32.mrb[0].mxu0
        %347 = vmatprep.mubr.bf16.mxu0 0
        %348 = vmatmul.mubr.bf16.gmra.mrb[0].mxu0 %v282
        %v349 = vpop.f32.mrb[0].mxu0
        %v350 = vadd.f32 %v253, %v349
        %v351 = vpop.f32.mrb[0].mxu0
        %v352 = vpop.f32.mrb[0].mxu0
        %v353 = vadd.f32 %v253, %v352
        %v354 = vpop.f32.mrb[0].mxu0
        %355 = vmatprep.mubr.bf16.mxu0 0
        %356 = vmatmul.mubr.bf16.gmra.mrb[0].mxu0 %v285
        %v357 = vpop.f32.mrb[0].mxu0
        %v358 = vadd.f32 %v253, %v357
        %v359 = vpop.f32.mrb[0].mxu0
        %v360 = vpop.f32.mrb[0].mxu0
        %v361 = vadd.f32 %v253, %v360
        %v362 = vpop.f32.mrb[0].mxu0
        %363 = vmatprep.mubr.bf16.mxu0 0
        %364 = vmatmul.mubr.bf16.gmra.mrb[0].mxu0 %v288
        %v365 = vpop.f32.mrb[0].mxu0
        %v366 = vadd.f32 %v253, %v365
        %v367 = vpop.f32.mrb[0].mxu0
        %v368 = vpop.f32.mrb[0].mxu0
        %v369 = vadd.f32 %v253, %v368
        %v370 = vpop.f32.mrb[0].mxu0
        %371 = vmatprep.mubr.bf16.mxu0 0
        %372 = vmatmul.mubr.bf16.gmra.mrb[0].mxu0 %v291
        %v373 = vpop.f32.mrb[0].mxu0
        %v374 = vadd.f32 %v253, %v373
        %v375 = vpop.f32.mrb[0].mxu0
        %v376 = vpop.f32.mrb[0].mxu0
        %v377 = vadd.f32 %v253, %v376
        %v378 = vpop.f32.mrb[0].mxu0
        %379 = vmatprep.mubr.bf16.mxu0 0
        %380 = vmatmul.mubr.bf16.gmra.mrb[0].mxu0 %v294
        %v381 = vpop.f32.mrb[0].mxu0
        %v382 = vadd.f32 %v253, %v381
        %v383 = vpop.f32.mrb[0].mxu0
        %v384 = vpop.f32.mrb[0].mxu0
        %v385 = vadd.f32 %v253, %v384
        %v386 = vpop.f32.mrb[0].mxu0
        %387 = vmatprep.mubr.bf16.mxu0 0
        %388 = vmatmul.mubr.bf16.gmra.mrb[0].mxu0 %v297
        %v389 = vpop.f32.mrb[0].mxu0
        %v390 = vadd.f32 %v253, %v389
        %v391 = vpop.f32.mrb[0].mxu0
        %v392 = vpop.f32.mrb[0].mxu0
        %v393 = vadd.f32 %v253, %v392
        %v394 = vpop.f32.mrb[0].mxu0
        %395 = vdwg.mxu0
        %vm396 = vcmp.ge.f32.partialorder %v334, 0.0
        %vm397 = vcmp.ge.f32.partialorder %v337, 0.0
        %vm398 = vcmp.ge.f32.partialorder %v342, 0.0
        %vm399 = vcmp.ge.f32.partialorder %v345, 0.0
        %vm400 = vcmp.ge.f32.partialorder %v350, 0.0
        %vm401 = vcmp.ge.f32.partialorder %v353, 0.0
        %vm402 = vcmp.ge.f32.partialorder %v358, 0.0
        %vm403 = vcmp.ge.f32.partialorder %v361, 0.0
        %vm404 = vcmp.ge.f32.partialorder %v366, 0.0
        %vm405 = vcmp.ge.f32.partialorder %v369, 0.0
        %vm406 = vcmp.ge.f32.partialorder %v374, 0.0
        %vm407 = vcmp.ge.f32.partialorder %v377, 0.0
        %vm408 = vcmp.ge.f32.partialorder %v382, 0.0
        %vm409 = vcmp.ge.f32.partialorder %v385, 0.0
        %vm410 = vcmp.ge.f32.partialorder %v390, 0.0
        %vm411 = vcmp.ge.f32.partialorder %v393, 0.0
        %v412 = vstv %s229
        %v413 = vmul.f32 %v412, %v334
        %v414 = vmul.f32 %v412, %v337
        %v415 = vmul.f32 %v412, %v342
        %v416 = vmul.f32 %v412, %v345
        %v417 = vmul.f32 %v412, %v350
        %v418 = vmul.f32 %v412, %v353
        %v419 = vmul.f32 %v412, %v358
        %v420 = vmul.f32 %v412, %v361
        %v421 = vmul.f32 %v412, %v366
        %v422 = vmul.f32 %v412, %v369
        %v423 = vmul.f32 %v412, %v374
        %v424 = vmul.f32 %v412, %v377
        %v425 = vmul.f32 %v412, %v382
        %v426 = vmul.f32 %v412, %v385
        %v427 = vmul.f32 %v412, %v390
        %v428 = vmul.f32 %v412, %v393
        %v429 = vsel %vm396, %v334, %v413
        %v430 = vsel %vm397, %v337, %v414
        %v431 = vsel %vm398, %v342, %v415
        %v432 = vsel %vm399, %v345, %v416
        %v433 = vsel %vm400, %v350, %v417
        %v434 = vsel %vm401, %v353, %v418
        %v435 = vsel %vm402, %v358, %v419
        %v436 = vsel %vm403, %v361, %v420
        %v437 = vsel %vm404, %v366, %v421
        %v438 = vsel %vm405, %v369, %v422
        %v439 = vsel %vm406, %v374, %v423
        %v440 = vsel %vm407, %v377, %v424
        %v441 = vsel %vm408, %v382, %v425
        %v442 = vsel %vm409, %v385, %v426
        %v443 = vsel %vm410, %v390, %v427
        %v444 = vsel %vm411, %v393, %v428
        %v445 = vld [vmem:[#allocation2 + $0x30] sm:$0xf]
        %v446 = vld [vmem:[#allocation2 + $0x3c] sm:$0xf]
        %v447 = vld [vmem:[#allocation2 + $0x48] sm:$0xf]
        %v448 = vld [vmem:[#allocation2 + $0x54] sm:$0xf]
        %v449 = vld [vmem:[#allocation2 + $0x60] sm:$0xf]
        %v450 = vld [vmem:[#allocation2 + $0x6c] sm:$0xf]
        %v451 = vld [vmem:[#allocation2 + $0x78] sm:$0xf]
        %v452 = vld [vmem:[#allocation2 + $0x84] sm:$0xf]
        %v453 = vld [vmem:[#allocation2 + $0x90] sm:$0xf]
        %v454 = vld [vmem:[#allocation2 + $0x9c] sm:$0xf]
        %v455 = vld [vmem:[#allocation2 + $0xa8] sm:$0xf]
        %v456 = vld [vmem:[#allocation2 + $0xb4] sm:$0xf]
        %v457 = vld [vmem:[#allocation2 + $0xc0] sm:$0xf]
        %v458 = vld [vmem:[#allocation2 + $0xcc] sm:$0xf]
        %v459 = vld [vmem:[#allocation2 + $0xd8] sm:$0xf]
        %v460 = vld [vmem:[#allocation2 + $0xe4] sm:$0xf]
        %v461 = vld [vmem:[%s2 + $0x1] ss:$0 sm:$0xff]
        %v462 = vpack.c.bf16 %v430, %v429
        %v463 = vpack.c.bf16 %v432, %v431
        %v464 = vpack.c.bf16 %v434, %v433
        %v465 = vpack.c.bf16 %v436, %v435
        %v466 = vpack.c.bf16 %v438, %v437
        %v467 = vpack.c.bf16 %v440, %v439
        %v468 = vpack.c.bf16 %v442, %v441
        %v469 = vpack.c.bf16 %v444, %v443
        %v486 = vunpack.c.l.b16 %v445
        %v487 = vunpack.c.l.b16 %v446
        %v488 = vunpack.c.l.b16 %v447
        %v489 = vunpack.c.l.b16 %v448
        %v490 = vunpack.c.l.b16 %v449
        %v491 = vunpack.c.l.b16 %v450
        %v492 = vunpack.c.l.b16 %v451
        %v493 = vunpack.c.l.b16 %v452
        %v494 = vunpack.c.l.b16 %v453
        %v495 = vunpack.c.l.b16 %v454
        %v496 = vunpack.c.l.b16 %v455
        %v497 = vunpack.c.l.b16 %v456
        %v498 = vunpack.c.l.b16 %v457
        %v499 = vunpack.c.l.b16 %v458
        %v500 = vunpack.c.l.b16 %v459
        %v501 = vunpack.c.l.b16 %v460
        %v502 = vpack.c.b16 %v487, %v486
        %v503 = vpack.c.b16 %v489, %v488
        %v504 = vpack.c.b16 %v491, %v490
        %v505 = vpack.c.b16 %v493, %v492
        %v506 = vpack.c.b16 %v495, %v494
        %v507 = vpack.c.b16 %v497, %v496
        %v508 = vpack.c.b16 %v499, %v498
        %v509 = vpack.c.b16 %v501, %v500
        %518 = vmatprep.subr.bf16.mxu0 0
        %519 = vmatpush1.bf16.msra.mxu0 %v502
        %520 = vmatprep.subr.bf16.mxu0 0
        %521 = vmatpush1.bf16.msra.mxu0 %v503
        %522 = vmatprep.subr.bf16.mxu0 0
        %523 = vmatpush1.bf16.msra.mxu0 %v504
        %524 = vmatprep.subr.bf16.mxu0 0
        %525 = vmatpush1.bf16.msra.mxu0 %v505
        %526 = vmatprep.subr.bf16.mxu0 0
        %527 = vmatpush1.bf16.msra.mxu0 %v506
        %528 = vmatprep.subr.bf16.mxu0 0
        %529 = vmatpush1.bf16.msra.mxu0 %v507
        %530 = vmatprep.subr.bf16.mxu0 0
        %531 = vmatpush1.bf16.msra.mxu0 %v508
        %532 = vmatprep.subr.bf16.mxu0 0
        %533 = vmatpush1.bf16.msra.mxu0 %v509
        %534 = vmatprep.subr.bf16.mxu0 0
        %535 = vmatpush1.bf16.msra.mxu0 0
        %536 = vmatprep.subr.bf16.mxu0 0
        %537 = vmatpush1.bf16.msra.mxu0 0
        %538 = vmatprep.subr.bf16.mxu0 0
        %539 = vmatpush1.bf16.msra.mxu0 0
        %540 = vmatprep.subr.bf16.mxu0 0
        %541 = vmatpush1.bf16.msra.mxu0 0
        %542 = vmatprep.subr.bf16.mxu0 0
        %543 = vmatpush1.bf16.msra.mxu0 0
        %544 = vmatprep.subr.bf16.mxu0 0
        %545 = vmatpush1.bf16.msra.mxu0 0
        %546 = vmatprep.subr.bf16.mxu0 0
        %547 = vmatpush1.bf16.msra.mxu0 0
        %548 = vmatprep.subr.bf16.mxu0 0
        %549 = vmatpush1.bf16.msra.mxu0 0
        %550 = vmatprep.mubr.bf16.mxu0 0
        %551 = vmatmul.mubr.bf16.gmra.mrb[0].mxu0 %v462
        %v552 = vpop.f32.mrb[0].mxu0
        %v553 = vadd.f32 %v461, %v552
        %v554 = vpop.f32.mrb[0].mxu0
        %v555 = vpop.f32.mrb[0].mxu0
        %v556 = vadd.f32 %v461, %v555
        %v557 = vpop.f32.mrb[0].mxu0
        %558 = vmatprep.mubr.bf16.mxu0 0
        %559 = vmatmul.mubr.bf16.gmra.mrb[0].mxu0 %v463
        %v560 = vpop.f32.mrb[0].mxu0
        %v561 = vadd.f32 %v461, %v560
        %v562 = vpop.f32.mrb[0].mxu0
        %v563 = vpop.f32.mrb[0].mxu0
        %v564 = vadd.f32 %v461, %v563
        %v565 = vpop.f32.mrb[0].mxu0
        %566 = vmatprep.mubr.bf16.mxu0 0
        %567 = vmatmul.mubr.bf16.gmra.mrb[0].mxu0 %v464
        %v568 = vpop.f32.mrb[0].mxu0
        %v569 = vadd.f32 %v461, %v568
        %v570 = vpop.f32.mrb[0].mxu0
        %v571 = vpop.f32.mrb[0].mxu0
        %v572 = vadd.f32 %v461, %v571
        %v573 = vpop.f32.mrb[0].mxu0
        %574 = vmatprep.mubr.bf16.mxu0 0
        %575 = vmatmul.mubr.bf16.gmra.mrb[0].mxu0 %v465
        %v576 = vpop.f32.mrb[0].mxu0
        %v577 = vadd.f32 %v461, %v576
        %v578 = vpop.f32.mrb[0].mxu0
        %v579 = vpop.f32.mrb[0].mxu0
        %v580 = vadd.f32 %v461, %v579
        %v581 = vpop.f32.mrb[0].mxu0
        %582 = vmatprep.mubr.bf16.mxu0 0
        %583 = vmatmul.mubr.bf16.gmra.mrb[0].mxu0 %v466
        %v584 = vpop.f32.mrb[0].mxu0
        %v585 = vadd.f32 %v461, %v584
        %v586 = vpop.f32.mrb[0].mxu0
        %v587 = vpop.f32.mrb[0].mxu0
        %v588 = vadd.f32 %v461, %v587
        %v589 = vpop.f32.mrb[0].mxu0
        %590 = vmatprep.mubr.bf16.mxu0 0
        %591 = vmatmul.mubr.bf16.gmra.mrb[0].mxu0 %v467
        %v592 = vpop.f32.mrb[0].mxu0
        %v593 = vadd.f32 %v461, %v592
        %v594 = vpop.f32.mrb[0].mxu0
        %v595 = vpop.f32.mrb[0].mxu0
        %v596 = vadd.f32 %v461, %v595
        %v597 = vpop.f32.mrb[0].mxu0
        %598 = vmatprep.mubr.bf16.mxu0 0
        %599 = vmatmul.mubr.bf16.gmra.mrb[0].mxu0 %v468
        %v600 = vpop.f32.mrb[0].mxu0
        %v601 = vadd.f32 %v461, %v600
        %v602 = vpop.f32.mrb[0].mxu0
        %v603 = vpop.f32.mrb[0].mxu0
        %v604 = vadd.f32 %v461, %v603
        %v605 = vpop.f32.mrb[0].mxu0
        %606 = vmatprep.mubr.bf16.mxu0 0
        %607 = vmatmul.mubr.bf16.gmra.mrb[0].mxu0 %v469
        %v608 = vpop.f32.mrb[0].mxu0
        %v609 = vadd.f32 %v461, %v608
        %v610 = vpop.f32.mrb[0].mxu0
        %v611 = vpop.f32.mrb[0].mxu0
        %v612 = vadd.f32 %v461, %v611
        %v613 = vpop.f32.mrb[0].mxu0
        %614 = vdwg.mxu0
        %vm615 = vcmp.ge.f32.partialorder %v553, 0.0
        %vm616 = vcmp.ge.f32.partialorder %v556, 0.0
        %vm617 = vcmp.ge.f32.partialorder %v561, 0.0
        %vm618 = vcmp.ge.f32.partialorder %v564, 0.0
        %vm619 = vcmp.ge.f32.partialorder %v569, 0.0
        %vm620 = vcmp.ge.f32.partialorder %v572, 0.0
        %vm621 = vcmp.ge.f32.partialorder %v577, 0.0
        %vm622 = vcmp.ge.f32.partialorder %v580, 0.0
        %vm623 = vcmp.ge.f32.partialorder %v585, 0.0
        %vm624 = vcmp.ge.f32.partialorder %v588, 0.0
        %vm625 = vcmp.ge.f32.partialorder %v593, 0.0
        %vm626 = vcmp.ge.f32.partialorder %v596, 0.0
        %vm627 = vcmp.ge.f32.partialorder %v601, 0.0
        %vm628 = vcmp.ge.f32.partialorder %v604, 0.0
        %vm629 = vcmp.ge.f32.partialorder %v609, 0.0
        %vm630 = vcmp.ge.f32.partialorder %v612, 0.0
        %v631 = vstv %s230
        %v632 = vmul.f32 %v631, %v553
        %v633 = vmul.f32 %v631, %v556
        %v634 = vmul.f32 %v631, %v561
        %v635 = vmul.f32 %v631, %v564
        %v636 = vmul.f32 %v631, %v569
        %v637 = vmul.f32 %v631, %v572
        %v638 = vmul.f32 %v631, %v577
        %v639 = vmul.f32 %v631, %v580
        %v640 = vmul.f32 %v631, %v585
        %v641 = vmul.f32 %v631, %v588
        %v642 = vmul.f32 %v631, %v593
        %v643 = vmul.f32 %v631, %v596
        %v644 = vmul.f32 %v631, %v601
        %v645 = vmul.f32 %v631, %v604
        %v646 = vmul.f32 %v631, %v609
        %v647 = vmul.f32 %v631, %v612
        %v648 = vsel %vm615, %v553, %v632
        %v649 = vsel %vm616, %v556, %v633
        %v650 = vsel %vm617, %v561, %v634
        %v651 = vsel %vm618, %v564, %v635
        %v652 = vsel %vm619, %v569, %v636
        %v653 = vsel %vm620, %v572, %v637
        %v654 = vsel %vm621, %v577, %v638
        %v655 = vsel %vm622, %v580, %v639
        %v656 = vsel %vm623, %v585, %v640
        %v657 = vsel %vm624, %v588, %v641
        %v658 = vsel %vm625, %v593, %v642
        %v659 = vsel %vm626, %v596, %v643
        %v660 = vsel %vm627, %v601, %v644
        %v661 = vsel %vm628, %v604, %v645
        %v662 = vsel %vm629, %v609, %v646
        %v663 = vsel %vm630, %v612, %v647
        %v664 = vld [vmem:[#allocation2 + $0xf0] sm:$0xff]
        %v665 = vld [vmem:[#allocation2 + $0xfc] sm:$0xff]
        %v666 = vld [vmem:[#allocation2 + $0x108] sm:$0xff]
        %v667 = vld [vmem:[#allocation2 + $0x114] sm:$0xff]
        %v668 = vld [vmem:[#allocation2 + $0x120] sm:$0xff]
        %v669 = vld [vmem:[#allocation2 + $0x12c] sm:$0xff]
        %v670 = vld [vmem:[#allocation2 + $0x138] sm:$0xff]
        %v671 = vld [vmem:[#allocation2 + $0x144] sm:$0xff]
        %v672 = vld [vmem:[#allocation2 + $0x150] sm:$0xff]
        %v673 = vld [vmem:[#allocation2 + $0x15c] sm:$0xff]
        %v674 = vld [vmem:[#allocation2 + $0x168] sm:$0xff]
        %v675 = vld [vmem:[#allocation2 + $0x174] sm:$0xff]
        %v676 = vld [vmem:[#allocation2 + $0x180] sm:$0xff]
        %v677 = vld [vmem:[#allocation2 + $0x18c] sm:$0xff]
        %v678 = vld [vmem:[#allocation2 + $0x198] sm:$0xff]
        %v679 = vld [vmem:[#allocation2 + $0x1a4] sm:$0xff]
        %s680 = scalar_lea.vmem %s2, 2
        %v681 = vld [vmem:[%s680] ss:$8 sm:$0x3]
        %v682 = vpack.c.bf16 %v649, %v648
        %v683 = vpack.c.bf16 %v651, %v650
        %v684 = vpack.c.bf16 %v653, %v652
        %v685 = vpack.c.bf16 %v655, %v654
        %v686 = vpack.c.bf16 %v657, %v656
        %v687 = vpack.c.bf16 %v659, %v658
        %v688 = vpack.c.bf16 %v661, %v660
        %v689 = vpack.c.bf16 %v663, %v662
        %v691 = vlaneseq
        %v692 = vshrl.u32 %v691, 7
        %v693 = vsub.s32 0, %v692
        %v694 = vrot.slane %v681, %v693
        %v695 = vlaneseq
        %v696 = vshrl.u32 %v695, 7
        %v697 = vsub.s32 1, %v696
        %v698 = vrot.slane %v681, %v697
        %v717 = vunpack.c.l.b16 %v664
        %v718 = vunpack.c.h.b16 %v664
        %v719 = vunpack.c.l.b16 %v665
        %v720 = vunpack.c.h.b16 %v665
        %v721 = vunpack.c.l.b16 %v666
        %v722 = vunpack.c.h.b16 %v666
        %v723 = vunpack.c.l.b16 %v667
        %v724 = vunpack.c.h.b16 %v667
        %v725 = vunpack.c.l.b16 %v668
        %v726 = vunpack.c.h.b16 %v668
        %v727 = vunpack.c.l.b16 %v669
        %v728 = vunpack.c.h.b16 %v669
        %v729 = vunpack.c.l.b16 %v670
        %v730 = vunpack.c.h.b16 %v670
        %v731 = vunpack.c.l.b16 %v671
        %v732 = vunpack.c.h.b16 %v671
        %v733 = vunpack.c.l.b16 %v672
        %v734 = vunpack.c.h.b16 %v672
        %v735 = vunpack.c.l.b16 %v673
        %v736 = vunpack.c.h.b16 %v673
        %v737 = vunpack.c.l.b16 %v674
        %v738 = vunpack.c.h.b16 %v674
        %v739 = vunpack.c.l.b16 %v675
        %v740 = vunpack.c.h.b16 %v675
        %v741 = vunpack.c.l.b16 %v676
        %v742 = vunpack.c.h.b16 %v676
        %v743 = vunpack.c.l.b16 %v677
        %v744 = vunpack.c.h.b16 %v677
        %v745 = vunpack.c.l.b16 %v678
        %v746 = vunpack.c.h.b16 %v678
        %v747 = vunpack.c.l.b16 %v679
        %v748 = vunpack.c.h.b16 %v679
        %v749 = vpack.c.b16 %v719, %v717
        %v750 = vpack.c.b16 %v720, %v718
        %v751 = vpack.c.b16 %v723, %v721
        %v752 = vpack.c.b16 %v724, %v722
        %v753 = vpack.c.b16 %v727, %v725
        %v754 = vpack.c.b16 %v728, %v726
        %v755 = vpack.c.b16 %v731, %v729
        %v756 = vpack.c.b16 %v732, %v730
        %v757 = vpack.c.b16 %v735, %v733
        %v758 = vpack.c.b16 %v736, %v734
        %v759 = vpack.c.b16 %v739, %v737
        %v760 = vpack.c.b16 %v740, %v738
        %v761 = vpack.c.b16 %v743, %v741
        %v762 = vpack.c.b16 %v744, %v742
        %v763 = vpack.c.b16 %v747, %v745
        %v764 = vpack.c.b16 %v748, %v746
        %781 = vmatprep.subr.bf16.mxu0 %v750
        %782 = vmatpush1.bf16.msra.mxu0 %v749
        %783 = vmatprep.subr.bf16.mxu0 %v752
        %784 = vmatpush1.bf16.msra.mxu0 %v751
        %785 = vmatprep.subr.bf16.mxu0 %v754
        %786 = vmatpush1.bf16.msra.mxu0 %v753
        %787 = vmatprep.subr.bf16.mxu0 %v756
        %788 = vmatpush1.bf16.msra.mxu0 %v755
        %789 = vmatprep.subr.bf16.mxu0 %v758
        %790 = vmatpush1.bf16.msra.mxu0 %v757
        %791 = vmatprep.subr.bf16.mxu0 %v760
        %792 = vmatpush1.bf16.msra.mxu0 %v759
        %793 = vmatprep.subr.bf16.mxu0 %v762
        %794 = vmatpush1.bf16.msra.mxu0 %v761
        %795 = vmatprep.subr.bf16.mxu0 %v764
        %796 = vmatpush1.bf16.msra.mxu0 %v763
        %797 = vmatprep.subr.bf16.mxu0 0
        %798 = vmatpush1.bf16.msra.mxu0 0
        %799 = vmatprep.subr.bf16.mxu0 0
        %800 = vmatpush1.bf16.msra.mxu0 0
        %801 = vmatprep.subr.bf16.mxu0 0
        %802 = vmatpush1.bf16.msra.mxu0 0
        %803 = vmatprep.subr.bf16.mxu0 0
        %804 = vmatpush1.bf16.msra.mxu0 0
        %805 = vmatprep.subr.bf16.mxu0 0
        %806 = vmatpush1.bf16.msra.mxu0 0
        %807 = vmatprep.subr.bf16.mxu0 0
        %808 = vmatpush1.bf16.msra.mxu0 0
        %809 = vmatprep.subr.bf16.mxu0 0
        %810 = vmatpush1.bf16.msra.mxu0 0
        %811 = vmatprep.subr.bf16.mxu0 0
        %812 = vmatpush1.bf16.msra.mxu0 0
        %813 = vmatprep.mubr.bf16.mxu0 0
        %814 = vmatmul.mubr.bf16.gmra.mrb[0].mxu0 %v682
        %v815 = vpop.f32.mrb[0].mxu0
        %v816 = vadd.f32 %v694, %v815
        %v817 = vpop.f32.mrb[0].mxu0
        %v818 = vadd.f32 %v698, %v817
        %v819 = vpop.f32.mrb[0].mxu0
        %v820 = vadd.f32 %v694, %v819
        %v821 = vpop.f32.mrb[0].mxu0
        %v822 = vadd.f32 %v698, %v821
        %823 = vmatprep.mubr.bf16.mxu0 0
        %824 = vmatmul.mubr.bf16.gmra.mrb[0].mxu0 %v683
        %v825 = vpop.f32.mrb[0].mxu0
        %v826 = vadd.f32 %v694, %v825
        %v827 = vpop.f32.mrb[0].mxu0
        %v828 = vadd.f32 %v698, %v827
        %v829 = vpop.f32.mrb[0].mxu0
        %v830 = vadd.f32 %v694, %v829
        %v831 = vpop.f32.mrb[0].mxu0
        %v832 = vadd.f32 %v698, %v831
        %833 = vmatprep.mubr.bf16.mxu0 0
        %834 = vmatmul.mubr.bf16.gmra.mrb[0].mxu0 %v684
        %v835 = vpop.f32.mrb[0].mxu0
        %v836 = vadd.f32 %v694, %v835
        %v837 = vpop.f32.mrb[0].mxu0
        %v838 = vadd.f32 %v698, %v837
        %v839 = vpop.f32.mrb[0].mxu0
        %v840 = vadd.f32 %v694, %v839
        %v841 = vpop.f32.mrb[0].mxu0
        %v842 = vadd.f32 %v698, %v841
        %843 = vmatprep.mubr.bf16.mxu0 0
        %844 = vmatmul.mubr.bf16.gmra.mrb[0].mxu0 %v685
        %v845 = vpop.f32.mrb[0].mxu0
        %v846 = vadd.f32 %v694, %v845
        %v847 = vpop.f32.mrb[0].mxu0
        %v848 = vadd.f32 %v698, %v847
        %v849 = vpop.f32.mrb[0].mxu0
        %v850 = vadd.f32 %v694, %v849
        %v851 = vpop.f32.mrb[0].mxu0
        %v852 = vadd.f32 %v698, %v851
        %853 = vmatprep.mubr.bf16.mxu0 0
        %854 = vmatmul.mubr.bf16.gmra.mrb[0].mxu0 %v686
        %v855 = vpop.f32.mrb[0].mxu0
        %v856 = vadd.f32 %v694, %v855
        %v857 = vpop.f32.mrb[0].mxu0
        %v858 = vadd.f32 %v698, %v857
        %v859 = vpop.f32.mrb[0].mxu0
        %v860 = vadd.f32 %v694, %v859
        %v861 = vpop.f32.mrb[0].mxu0
        %v862 = vadd.f32 %v698, %v861
        %863 = vmatprep.mubr.bf16.mxu0 0
        %864 = vmatmul.mubr.bf16.gmra.mrb[0].mxu0 %v687
        %v865 = vpop.f32.mrb[0].mxu0
        %v866 = vadd.f32 %v694, %v865
        %v867 = vpop.f32.mrb[0].mxu0
        %v868 = vadd.f32 %v698, %v867
        %v869 = vpop.f32.mrb[0].mxu0
        %v870 = vadd.f32 %v694, %v869
        %v871 = vpop.f32.mrb[0].mxu0
        %v872 = vadd.f32 %v698, %v871
        %873 = vmatprep.mubr.bf16.mxu0 0
        %874 = vmatmul.mubr.bf16.gmra.mrb[0].mxu0 %v688
        %v875 = vpop.f32.mrb[0].mxu0
        %v876 = vadd.f32 %v694, %v875
        %v877 = vpop.f32.mrb[0].mxu0
        %v878 = vadd.f32 %v698, %v877
        %v879 = vpop.f32.mrb[0].mxu0
        %v880 = vadd.f32 %v694, %v879
        %v881 = vpop.f32.mrb[0].mxu0
        %v882 = vadd.f32 %v698, %v881
        %883 = vmatprep.mubr.bf16.mxu0 0
        %884 = vmatmul.mubr.bf16.gmra.mrb[0].mxu0 %v689
        %v885 = vpop.f32.mrb[0].mxu0
        %v886 = vadd.f32 %v694, %v885
        %v887 = vpop.f32.mrb[0].mxu0
        %v888 = vadd.f32 %v698, %v887
        %v889 = vpop.f32.mrb[0].mxu0
        %v890 = vadd.f32 %v694, %v889
        %v891 = vpop.f32.mrb[0].mxu0
        %v892 = vadd.f32 %v698, %v891
        %893 = vdwg.mxu0
        %vm894 = vcmp.ge.f32.partialorder %v816, 0.0
        %vm895 = vcmp.ge.f32.partialorder %v818, 0.0
        %vm896 = vcmp.ge.f32.partialorder %v820, 0.0
        %vm897 = vcmp.ge.f32.partialorder %v822, 0.0
        %vm898 = vcmp.ge.f32.partialorder %v826, 0.0
        %vm899 = vcmp.ge.f32.partialorder %v828, 0.0
        %vm900 = vcmp.ge.f32.partialorder %v830, 0.0
        %vm901 = vcmp.ge.f32.partialorder %v832, 0.0
        %vm902 = vcmp.ge.f32.partialorder %v836, 0.0
        %vm903 = vcmp.ge.f32.partialorder %v838, 0.0
        %vm904 = vcmp.ge.f32.partialorder %v840, 0.0
        %vm905 = vcmp.ge.f32.partialorder %v842, 0.0
        %vm906 = vcmp.ge.f32.partialorder %v846, 0.0
        %vm907 = vcmp.ge.f32.partialorder %v848, 0.0
        %vm908 = vcmp.ge.f32.partialorder %v850, 0.0
        %vm909 = vcmp.ge.f32.partialorder %v852, 0.0
        %vm910 = vcmp.ge.f32.partialorder %v856, 0.0
        %vm911 = vcmp.ge.f32.partialorder %v858, 0.0
        %vm912 = vcmp.ge.f32.partialorder %v860, 0.0
        %vm913 = vcmp.ge.f32.partialorder %v862, 0.0
        %vm914 = vcmp.ge.f32.partialorder %v866, 0.0
        %vm915 = vcmp.ge.f32.partialorder %v868, 0.0
        %vm916 = vcmp.ge.f32.partialorder %v870, 0.0
        %vm917 = vcmp.ge.f32.partialorder %v872, 0.0
        %vm918 = vcmp.ge.f32.partialorder %v876, 0.0
        %vm919 = vcmp.ge.f32.partialorder %v878, 0.0
        %vm920 = vcmp.ge.f32.partialorder %v880, 0.0
        %vm921 = vcmp.ge.f32.partialorder %v882, 0.0
        %vm922 = vcmp.ge.f32.partialorder %v886, 0.0
        %vm923 = vcmp.ge.f32.partialorder %v888, 0.0
        %vm924 = vcmp.ge.f32.partialorder %v890, 0.0
        %vm925 = vcmp.ge.f32.partialorder %v892, 0.0
        %v926 = vstv %s231
        %v927 = vmul.f32 %v926, %v816
        %v928 = vmul.f32 %v926, %v818
        %v929 = vmul.f32 %v926, %v820
        %v930 = vmul.f32 %v926, %v822
        %v931 = vmul.f32 %v926, %v826
        %v932 = vmul.f32 %v926, %v828
        %v933 = vmul.f32 %v926, %v830
        %v934 = vmul.f32 %v926, %v832
        %v935 = vmul.f32 %v926, %v836
        %v936 = vmul.f32 %v926, %v838
        %v937 = vmul.f32 %v926, %v840
        %v938 = vmul.f32 %v926, %v842
        %v939 = vmul.f32 %v926, %v846
        %v940 = vmul.f32 %v926, %v848
        %v941 = vmul.f32 %v926, %v850
        %v942 = vmul.f32 %v926, %v852
        %v943 = vmul.f32 %v926, %v856
        %v944 = vmul.f32 %v926, %v858
        %v945 = vmul.f32 %v926, %v860
        %v946 = vmul.f32 %v926, %v862
        %v947 = vmul.f32 %v926, %v866
        %v948 = vmul.f32 %v926, %v868
        %v949 = vmul.f32 %v926, %v870
        %v950 = vmul.f32 %v926, %v872
        %v951 = vmul.f32 %v926, %v876
        %v952 = vmul.f32 %v926, %v878
        %v953 = vmul.f32 %v926, %v880
        %v954 = vmul.f32 %v926, %v882
        %v955 = vmul.f32 %v926, %v886
        %v956 = vmul.f32 %v926, %v888
        %v957 = vmul.f32 %v926, %v890
        %v958 = vmul.f32 %v926, %v892
        %v959 = vsel %vm894, %v816, %v927
        %v960 = vsel %vm895, %v818, %v928
        %v961 = vsel %vm896, %v820, %v929
        %v962 = vsel %vm897, %v822, %v930
        %v963 = vsel %vm898, %v826, %v931
        %v964 = vsel %vm899, %v828, %v932
        %v965 = vsel %vm900, %v830, %v933
        %v966 = vsel %vm901, %v832, %v934
        %v967 = vsel %vm902, %v836, %v935
        %v968 = vsel %vm903, %v838, %v936
        %v969 = vsel %vm904, %v840, %v937
        %v970 = vsel %vm905, %v842, %v938
        %v971 = vsel %vm906, %v846, %v939
        %v972 = vsel %vm907, %v848, %v940
        %v973 = vsel %vm908, %v850, %v941
        %v974 = vsel %vm909, %v852, %v942
        %v975 = vsel %vm910, %v856, %v943
        %v976 = vsel %vm911, %v858, %v944
        %v977 = vsel %vm912, %v860, %v945
        %v978 = vsel %vm913, %v862, %v946
        %v979 = vsel %vm914, %v866, %v947
        %v980 = vsel %vm915, %v868, %v948
        %v981 = vsel %vm916, %v870, %v949
        %v982 = vsel %vm917, %v872, %v950
        %v983 = vsel %vm918, %v876, %v951
        %v984 = vsel %vm919, %v878, %v952
        %v985 = vsel %vm920, %v880, %v953
        %v986 = vsel %vm921, %v882, %v954
        %v987 = vsel %vm922, %v886, %v955
        %v988 = vsel %vm923, %v888, %v956
        %v989 = vsel %vm924, %v890, %v957
        %v990 = vsel %vm925, %v892, %v958
        %v991 = vld [vmem:[#allocation2 + $0x1b0] sm:$0xff]
        %v992 = vld [vmem:[#allocation2 + $0x1b8] sm:$0xf]
        %v993 = vld [vmem:[#allocation2 + $0x1bc] sm:$0xff]
        %v994 = vld [vmem:[#allocation2 + $0x1c4] sm:$0xf]
        %v995 = vld [vmem:[#allocation2 + $0x1c8] sm:$0xff]
        %v996 = vld [vmem:[#allocation2 + $0x1d0] sm:$0xf]
        %v997 = vld [vmem:[#allocation2 + $0x1d4] sm:$0xff]
        %v998 = vld [vmem:[#allocation2 + $0x1dc] sm:$0xf]
        %v999 = vld [vmem:[#allocation2 + $0x1e0] sm:$0xff]
        %v1000 = vld [vmem:[#allocation2 + $0x1e8] sm:$0xf]
        %v1001 = vld [vmem:[#allocation2 + $0x1ec] sm:$0xff]
        %v1002 = vld [vmem:[#allocation2 + $0x1f4] sm:$0xf]
        %v1003 = vld [vmem:[#allocation2 + $0x1f8] sm:$0xff]
        %v1004 = vld [vmem:[#allocation2 + $0x200] sm:$0xf]
        %v1005 = vld [vmem:[#allocation2 + $0x204] sm:$0xff]
        %v1006 = vld [vmem:[#allocation2 + $0x20c] sm:$0xf]
        %v1007 = vld [vmem:[#allocation2 + $0x210] sm:$0xff]
        %v1008 = vld [vmem:[#allocation2 + $0x218] sm:$0xf]
        %v1009 = vld [vmem:[#allocation2 + $0x21c] sm:$0xff]
        %v1010 = vld [vmem:[#allocation2 + $0x224] sm:$0xf]
        %v1011 = vld [vmem:[#allocation2 + $0x228] sm:$0xff]
        %v1012 = vld [vmem:[#allocation2 + $0x230] sm:$0xf]
        %v1013 = vld [vmem:[#allocation2 + $0x234] sm:$0xff]
        %v1014 = vld [vmem:[#allocation2 + $0x23c] sm:$0xf]
        %v1015 = vld [vmem:[#allocation2 + $0x240] sm:$0xff]
        %v1016 = vld [vmem:[#allocation2 + $0x248] sm:$0xf]
        %v1017 = vld [vmem:[#allocation2 + $0x24c] sm:$0xff]
        %v1018 = vld [vmem:[#allocation2 + $0x254] sm:$0xf]
        %v1019 = vld [vmem:[#allocation2 + $0x258] sm:$0xff]
        %v1020 = vld [vmem:[#allocation2 + $0x260] sm:$0xf]
        %v1021 = vld [vmem:[#allocation2 + $0x264] sm:$0xff]
        %v1022 = vld [vmem:[#allocation2 + $0x26c] sm:$0xf]
        %v1023 = vld [vmem:[#allocation2 + $0x270] sm:$0xff]
        %v1024 = vld [vmem:[#allocation2 + $0x278] sm:$0xf]
        %v1025 = vld [vmem:[#allocation2 + $0x27c] sm:$0xff]
        %v1026 = vld [vmem:[#allocation2 + $0x284] sm:$0xf]
        %v1027 = vld [vmem:[#allocation2 + $0x288] sm:$0xff]
        %v1028 = vld [vmem:[#allocation2 + $0x290] sm:$0xf]
        %v1029 = vld [vmem:[#allocation2 + $0x294] sm:$0xff]
        %v1030 = vld [vmem:[#allocation2 + $0x29c] sm:$0xf]
        %v1031 = vld [vmem:[#allocation2 + $0x2a0] sm:$0xff]
        %v1032 = vld [vmem:[#allocation2 + $0x2a8] sm:$0xf]
        %v1033 = vld [vmem:[#allocation2 + $0x2ac] sm:$0xff]
        %v1034 = vld [vmem:[#allocation2 + $0x2b4] sm:$0xf]
        %v1035 = vld [vmem:[#allocation2 + $0x2b8] sm:$0xff]
        %v1036 = vld [vmem:[#allocation2 + $0x2c0] sm:$0xf]
        %v1037 = vld [vmem:[#allocation2 + $0x2c4] sm:$0xff]
        %v1038 = vld [vmem:[#allocation2 + $0x2cc] sm:$0xf]
        %v1039 = vld [vmem:[#allocation2 + $0x2d0] sm:$0xff]
        %v1040 = vld [vmem:[#allocation2 + $0x2d8] sm:$0xf]
        %v1041 = vld [vmem:[#allocation2 + $0x2dc] sm:$0xff]
        %v1042 = vld [vmem:[#allocation2 + $0x2e4] sm:$0xf]
        %v1043 = vld [vmem:[#allocation2 + $0x2e8] sm:$0xff]
        %v1044 = vld [vmem:[#allocation2 + $0x2f0] sm:$0xf]
        %v1045 = vld [vmem:[#allocation2 + $0x2f4] sm:$0xff]
        %v1046 = vld [vmem:[#allocation2 + $0x2fc] sm:$0xf]
        %v1047 = vld [vmem:[#allocation2 + $0x300] sm:$0xff]
        %v1048 = vld [vmem:[#allocation2 + $0x308] sm:$0xf]
        %v1049 = vld [vmem:[#allocation2 + $0x30c] sm:$0xff]
        %v1050 = vld [vmem:[#allocation2 + $0x314] sm:$0xf]
        %v1051 = vld [vmem:[#allocation2 + $0x318] sm:$0xff]
        %v1052 = vld [vmem:[#allocation2 + $0x320] sm:$0xf]
        %v1053 = vld [vmem:[#allocation2 + $0x324] sm:$0xff]
        %v1054 = vld [vmem:[#allocation2 + $0x32c] sm:$0xf]
        %s1055 = scalar_lea.vmem %s2, 3
        %v1056 = vld [vmem:[%s1055] ss:$8 sm:$0x7]
        %v1057 = vpack.c.bf16 %v961, %v959
        %v1058 = vpack.c.bf16 %v962, %v960
        %v1059 = vpack.c.bf16 %v965, %v963
        %v1060 = vpack.c.bf16 %v966, %v964
        %v1061 = vpack.c.bf16 %v969, %v967
        %v1062 = vpack.c.bf16 %v970, %v968
        %v1063 = vpack.c.bf16 %v973, %v971
        %v1064 = vpack.c.bf16 %v974, %v972
        %v1065 = vpack.c.bf16 %v977, %v975
        %v1066 = vpack.c.bf16 %v978, %v976
        %v1067 = vpack.c.bf16 %v981, %v979
        %v1068 = vpack.c.bf16 %v982, %v980
        %v1069 = vpack.c.bf16 %v985, %v983
        %v1070 = vpack.c.bf16 %v986, %v984
        %v1071 = vpack.c.bf16 %v989, %v987
        %v1072 = vpack.c.bf16 %v990, %v988
        %v1074 = vlaneseq
        %v1075 = vshrl.u32 %v1074, 7
        %v1076 = vsub.s32 0, %v1075
        %v1077 = vrot.slane %v1056, %v1076
        %v1078 = vlaneseq
        %v1079 = vshrl.u32 %v1078, 7
        %v1080 = vsub.s32 1, %v1079
        %v1081 = vrot.slane %v1056, %v1080
        %v1082 = vlaneseq
        %v1083 = vshrl.u32 %v1082, 7
        %v1084 = vsub.s32 2, %v1083
        %v1085 = vrot.slane %v1056, %v1084
        %v1153 = vunpack.c.l.b16 %v991
        %v1154 = vunpack.c.h.b16 %v991
        %v1155 = vunpack.c.l.b16 %v992
        %v1156 = vunpack.c.l.b16 %v993
        %v1157 = vunpack.c.h.b16 %v993
        %v1158 = vunpack.c.l.b16 %v994
        %v1159 = vunpack.c.l.b16 %v995
        %v1160 = vunpack.c.h.b16 %v995
        %v1161 = vunpack.c.l.b16 %v996
        %v1162 = vunpack.c.l.b16 %v997
        %v1163 = vunpack.c.h.b16 %v997
        %v1164 = vunpack.c.l.b16 %v998
        %v1165 = vunpack.c.l.b16 %v999
        %v1166 = vunpack.c.h.b16 %v999
        %v1167 = vunpack.c.l.b16 %v1000
        %v1168 = vunpack.c.l.b16 %v1001
        %v1169 = vunpack.c.h.b16 %v1001
        %v1170 = vunpack.c.l.b16 %v1002
        %v1171 = vunpack.c.l.b16 %v1003
        %v1172 = vunpack.c.h.b16 %v1003
        %v1173 = vunpack.c.l.b16 %v1004
        %v1174 = vunpack.c.l.b16 %v1005
        %v1175 = vunpack.c.h.b16 %v1005
        %v1176 = vunpack.c.l.b16 %v1006
        %v1177 = vunpack.c.l.b16 %v1007
        %v1178 = vunpack.c.h.b16 %v1007
        %v1179 = vunpack.c.l.b16 %v1008
        %v1180 = vunpack.c.l.b16 %v1009
        %v1181 = vunpack.c.h.b16 %v1009
        %v1182 = vunpack.c.l.b16 %v1010
        %v1183 = vunpack.c.l.b16 %v1011
        %v1184 = vunpack.c.h.b16 %v1011
        %v1185 = vunpack.c.l.b16 %v1012
        %v1186 = vunpack.c.l.b16 %v1013
        %v1187 = vunpack.c.h.b16 %v1013
        %v1188 = vunpack.c.l.b16 %v1014
        %v1189 = vunpack.c.l.b16 %v1015
        %v1190 = vunpack.c.h.b16 %v1015
        %v1191 = vunpack.c.l.b16 %v1016
        %v1192 = vunpack.c.l.b16 %v1017
        %v1193 = vunpack.c.h.b16 %v1017
        %v1194 = vunpack.c.l.b16 %v1018
        %v1195 = vunpack.c.l.b16 %v1019
        %v1196 = vunpack.c.h.b16 %v1019
        %v1197 = vunpack.c.l.b16 %v1020
        %v1198 = vunpack.c.l.b16 %v1021
        %v1199 = vunpack.c.h.b16 %v1021
        %v1200 = vunpack.c.l.b16 %v1022
        %v1201 = vunpack.c.l.b16 %v1023
        %v1202 = vunpack.c.h.b16 %v1023
        %v1203 = vunpack.c.l.b16 %v1024
        %v1204 = vunpack.c.l.b16 %v1025
        %v1205 = vunpack.c.h.b16 %v1025
        %v1206 = vunpack.c.l.b16 %v1026
        %v1207 = vunpack.c.l.b16 %v1027
        %v1208 = vunpack.c.h.b16 %v1027
        %v1209 = vunpack.c.l.b16 %v1028
        %v1210 = vunpack.c.l.b16 %v1029
        %v1211 = vunpack.c.h.b16 %v1029
        %v1212 = vunpack.c.l.b16 %v1030
        %v1213 = vunpack.c.l.b16 %v1031
        %v1214 = vunpack.c.h.b16 %v1031
        %v1215 = vunpack.c.l.b16 %v1032
        %v1216 = vunpack.c.l.b16 %v1033
        %v1217 = vunpack.c.h.b16 %v1033
        %v1218 = vunpack.c.l.b16 %v1034
        %v1219 = vunpack.c.l.b16 %v1035
        %v1220 = vunpack.c.h.b16 %v1035
        %v1221 = vunpack.c.l.b16 %v1036
        %v1222 = vunpack.c.l.b16 %v1037
        %v1223 = vunpack.c.h.b16 %v1037
        %v1224 = vunpack.c.l.b16 %v1038
        %v1225 = vunpack.c.l.b16 %v1039
        %v1226 = vunpack.c.h.b16 %v1039
        %v1227 = vunpack.c.l.b16 %v1040
        %v1228 = vunpack.c.l.b16 %v1041
        %v1229 = vunpack.c.h.b16 %v1041
        %v1230 = vunpack.c.l.b16 %v1042
        %v1231 = vunpack.c.l.b16 %v1043
        %v1232 = vunpack.c.h.b16 %v1043
        %v1233 = vunpack.c.l.b16 %v1044
        %v1234 = vunpack.c.l.b16 %v1045
        %v1235 = vunpack.c.h.b16 %v1045
        %v1236 = vunpack.c.l.b16 %v1046
        %v1237 = vunpack.c.l.b16 %v1047
        %v1238 = vunpack.c.h.b16 %v1047
        %v1239 = vunpack.c.l.b16 %v1048
        %v1240 = vunpack.c.l.b16 %v1049
        %v1241 = vunpack.c.h.b16 %v1049
        %v1242 = vunpack.c.l.b16 %v1050
        %v1243 = vunpack.c.l.b16 %v1051
        %v1244 = vunpack.c.h.b16 %v1051
        %v1245 = vunpack.c.l.b16 %v1052
        %v1246 = vunpack.c.l.b16 %v1053
        %v1247 = vunpack.c.h.b16 %v1053
        %v1248 = vunpack.c.l.b16 %v1054
        %v1249 = vpack.c.b16 %v1156, %v1153
        %v1250 = vpack.c.b16 %v1157, %v1154
        %v1251 = vpack.c.b16 %v1158, %v1155
        %v1252 = vpack.c.b16 %v1162, %v1159
        %v1253 = vpack.c.b16 %v1163, %v1160
        %v1254 = vpack.c.b16 %v1164, %v1161
        %v1255 = vpack.c.b16 %v1168, %v1165
        %v1256 = vpack.c.b16 %v1169, %v1166
        %v1257 = vpack.c.b16 %v1170, %v1167
        %v1258 = vpack.c.b16 %v1174, %v1171
        %v1259 = vpack.c.b16 %v1175, %v1172
        %v1260 = vpack.c.b16 %v1176, %v1173
        %v1261 = vpack.c.b16 %v1180, %v1177
        %v1262 = vpack.c.b16 %v1181, %v1178
        %v1263 = vpack.c.b16 %v1182, %v1179
        %v1264 = vpack.c.b16 %v1186, %v1183
        %v1265 = vpack.c.b16 %v1187, %v1184
        %v1266 = vpack.c.b16 %v1188, %v1185
        %v1267 = vpack.c.b16 %v1192, %v1189
        %v1268 = vpack.c.b16 %v1193, %v1190
        %v1269 = vpack.c.b16 %v1194, %v1191
        %v1270 = vpack.c.b16 %v1198, %v1195
        %v1271 = vpack.c.b16 %v1199, %v1196
        %v1272 = vpack.c.b16 %v1200, %v1197
        %v1273 = vpack.c.b16 %v1204, %v1201
        %v1274 = vpack.c.b16 %v1205, %v1202
        %v1275 = vpack.c.b16 %v1206, %v1203
        %v1276 = vpack.c.b16 %v1210, %v1207
        %v1277 = vpack.c.b16 %v1211, %v1208
        %v1278 = vpack.c.b16 %v1212, %v1209
        %v1279 = vpack.c.b16 %v1216, %v1213
        %v1280 = vpack.c.b16 %v1217, %v1214
        %v1281 = vpack.c.b16 %v1218, %v1215
        %v1282 = vpack.c.b16 %v1222, %v1219
        %v1283 = vpack.c.b16 %v1223, %v1220
        %v1284 = vpack.c.b16 %v1224, %v1221
        %v1285 = vpack.c.b16 %v1228, %v1225
        %v1286 = vpack.c.b16 %v1229, %v1226
        %v1287 = vpack.c.b16 %v1230, %v1227
        %v1288 = vpack.c.b16 %v1234, %v1231
        %v1289 = vpack.c.b16 %v1235, %v1232
        %v1290 = vpack.c.b16 %v1236, %v1233
        %v1291 = vpack.c.b16 %v1240, %v1237
        %v1292 = vpack.c.b16 %v1241, %v1238
        %v1293 = vpack.c.b16 %v1242, %v1239
        %v1294 = vpack.c.b16 %v1246, %v1243
        %v1295 = vpack.c.b16 %v1247, %v1244
        %v1296 = vpack.c.b16 %v1248, %v1245
        %1345 = vmatprep.subr.bf16.mxu0 %v1250
        %1346 = vmatpush1.bf16.msra.mxu0 %v1249
        %1347 = vmatprep.subr.bf16.mxu0 %v1253
        %1348 = vmatpush1.bf16.msra.mxu0 %v1252
        %1349 = vmatprep.subr.bf16.mxu0 %v1256
        %1350 = vmatpush1.bf16.msra.mxu0 %v1255
        %1351 = vmatprep.subr.bf16.mxu0 %v1259
        %1352 = vmatpush1.bf16.msra.mxu0 %v1258
        %1353 = vmatprep.subr.bf16.mxu0 %v1262
        %1354 = vmatpush1.bf16.msra.mxu0 %v1261
        %1355 = vmatprep.subr.bf16.mxu0 %v1265
        %1356 = vmatpush1.bf16.msra.mxu0 %v1264
        %1357 = vmatprep.subr.bf16.mxu0 %v1268
        %1358 = vmatpush1.bf16.msra.mxu0 %v1267
        %1359 = vmatprep.subr.bf16.mxu0 %v1271
        %1360 = vmatpush1.bf16.msra.mxu0 %v1270
        %1361 = vmatprep.subr.bf16.mxu0 %v1274
        %1362 = vmatpush1.bf16.msra.mxu0 %v1273
        %1363 = vmatprep.subr.bf16.mxu0 %v1277
        %1364 = vmatpush1.bf16.msra.mxu0 %v1276
        %1365 = vmatprep.subr.bf16.mxu0 %v1280
        %1366 = vmatpush1.bf16.msra.mxu0 %v1279
        %1367 = vmatprep.subr.bf16.mxu0 %v1283
        %1368 = vmatpush1.bf16.msra.mxu0 %v1282
        %1369 = vmatprep.subr.bf16.mxu0 %v1286
        %1370 = vmatpush1.bf16.msra.mxu0 %v1285
        %1371 = vmatprep.subr.bf16.mxu0 %v1289
        %1372 = vmatpush1.bf16.msra.mxu0 %v1288
        %1373 = vmatprep.subr.bf16.mxu0 %v1292
        %1374 = vmatpush1.bf16.msra.mxu0 %v1291
        %1375 = vmatprep.subr.bf16.mxu0 %v1295
        %1376 = vmatpush1.bf16.msra.mxu0 %v1294
        %1377 = vmatprep.mubr.bf16.mxu0 %v1058
        %1378 = vmatmul.mubr.bf16.gmra.mrb[0].mxu0 %v1057
        %v1379 = vpop.f32.mrb[0].mxu0
        %v1380 = vadd.f32 %v1077, %v1379
        %v1381 = vpop.f32.mrb[0].mxu0
        %v1382 = vadd.f32 %v1081, %v1381
        %v1383 = vpop.f32.mrb[0].mxu0
        %v1384 = vadd.f32 %v1077, %v1383
        %v1385 = vpop.f32.mrb[0].mxu0
        %v1386 = vadd.f32 %v1081, %v1385
        %1387 = vmatprep.mubr.bf16.mxu0 %v1060
        %1388 = vmatmul.mubr.bf16.gmra.mrb[0].mxu0 %v1059
        %v1389 = vpop.f32.mrb[0].mxu0
        %v1390 = vadd.f32 %v1077, %v1389
        %v1391 = vpop.f32.mrb[0].mxu0
        %v1392 = vadd.f32 %v1081, %v1391
        %v1393 = vpop.f32.mrb[0].mxu0
        %v1394 = vadd.f32 %v1077, %v1393
        %v1395 = vpop.f32.mrb[0].mxu0
        %v1396 = vadd.f32 %v1081, %v1395
        %1397 = vmatprep.mubr.bf16.mxu0 %v1062
        %1398 = vmatmul.mubr.bf16.gmra.mrb[0].mxu0 %v1061
        %v1399 = vpop.f32.mrb[0].mxu0
        %v1400 = vadd.f32 %v1077, %v1399
        %v1401 = vpop.f32.mrb[0].mxu0
        %v1402 = vadd.f32 %v1081, %v1401
        %v1403 = vpop.f32.mrb[0].mxu0
        %v1404 = vadd.f32 %v1077, %v1403
        %v1405 = vpop.f32.mrb[0].mxu0
        %v1406 = vadd.f32 %v1081, %v1405
        %1407 = vmatprep.mubr.bf16.mxu0 %v1064
        %1408 = vmatmul.mubr.bf16.gmra.mrb[0].mxu0 %v1063
        %v1409 = vpop.f32.mrb[0].mxu0
        %v1410 = vadd.f32 %v1077, %v1409
        %v1411 = vpop.f32.mrb[0].mxu0
        %v1412 = vadd.f32 %v1081, %v1411
        %v1413 = vpop.f32.mrb[0].mxu0
        %v1414 = vadd.f32 %v1077, %v1413
        %v1415 = vpop.f32.mrb[0].mxu0
        %v1416 = vadd.f32 %v1081, %v1415
        %1417 = vmatprep.mubr.bf16.mxu0 %v1066
        %1418 = vmatmul.mubr.bf16.gmra.mrb[0].mxu0 %v1065
        %v1419 = vpop.f32.mrb[0].mxu0
        %v1420 = vadd.f32 %v1077, %v1419
        %v1421 = vpop.f32.mrb[0].mxu0
        %v1422 = vadd.f32 %v1081, %v1421
        %v1423 = vpop.f32.mrb[0].mxu0
        %v1424 = vadd.f32 %v1077, %v1423
        %v1425 = vpop.f32.mrb[0].mxu0
        %v1426 = vadd.f32 %v1081, %v1425
        %1427 = vmatprep.mubr.bf16.mxu0 %v1068
        %1428 = vmatmul.mubr.bf16.gmra.mrb[0].mxu0 %v1067
        %v1429 = vpop.f32.mrb[0].mxu0
        %v1430 = vadd.f32 %v1077, %v1429
        %v1431 = vpop.f32.mrb[0].mxu0
        %v1432 = vadd.f32 %v1081, %v1431
        %v1433 = vpop.f32.mrb[0].mxu0
        %v1434 = vadd.f32 %v1077, %v1433
        %v1435 = vpop.f32.mrb[0].mxu0
        %v1436 = vadd.f32 %v1081, %v1435
        %1437 = vmatprep.mubr.bf16.mxu0 %v1070
        %1438 = vmatmul.mubr.bf16.gmra.mrb[0].mxu0 %v1069
        %v1439 = vpop.f32.mrb[0].mxu0
        %v1440 = vadd.f32 %v1077, %v1439
        %v1441 = vpop.f32.mrb[0].mxu0
        %v1442 = vadd.f32 %v1081, %v1441
        %v1443 = vpop.f32.mrb[0].mxu0
        %v1444 = vadd.f32 %v1077, %v1443
        %v1445 = vpop.f32.mrb[0].mxu0
        %v1446 = vadd.f32 %v1081, %v1445
        %1447 = vmatprep.mubr.bf16.mxu0 %v1072
        %1448 = vmatmul.mubr.bf16.gmra.mrb[0].mxu0 %v1071
        %v1449 = vpop.f32.mrb[0].mxu0
        %v1450 = vadd.f32 %v1077, %v1449
        %v1451 = vpop.f32.mrb[0].mxu0
        %v1452 = vadd.f32 %v1081, %v1451
        %v1453 = vpop.f32.mrb[0].mxu0
        %v1454 = vadd.f32 %v1077, %v1453
        %v1455 = vpop.f32.mrb[0].mxu0
        %v1456 = vadd.f32 %v1081, %v1455
        %1457 = vdwg.mxu0
        %1458 = vmatprep.subr.bf16.mxu0 0
        %1459 = vmatpush1.bf16.msra.mxu0 %v1251
        %1460 = vmatprep.subr.bf16.mxu0 0
        %1461 = vmatpush1.bf16.msra.mxu0 %v1254
        %1462 = vmatprep.subr.bf16.mxu0 0
        %1463 = vmatpush1.bf16.msra.mxu0 %v1257
        %1464 = vmatprep.subr.bf16.mxu0 0
        %1465 = vmatpush1.bf16.msra.mxu0 %v1260
        %1466 = vmatprep.subr.bf16.mxu0 0
        %1467 = vmatpush1.bf16.msra.mxu0 %v1263
        %1468 = vmatprep.subr.bf16.mxu0 0
        %1469 = vmatpush1.bf16.msra.mxu0 %v1266
        %1470 = vmatprep.subr.bf16.mxu0 0
        %1471 = vmatpush1.bf16.msra.mxu0 %v1269
        %1472 = vmatprep.subr.bf16.mxu0 0
        %1473 = vmatpush1.bf16.msra.mxu0 %v1272
        %1474 = vmatprep.subr.bf16.mxu0 0
        %1475 = vmatpush1.bf16.msra.mxu0 %v1275
        %1476 = vmatprep.subr.bf16.mxu0 0
        %1477 = vmatpush1.bf16.msra.mxu0 %v1278
        %1478 = vmatprep.subr.bf16.mxu0 0
        %1479 = vmatpush1.bf16.msra.mxu0 %v1281
        %1480 = vmatprep.subr.bf16.mxu0 0
        %1481 = vmatpush1.bf16.msra.mxu0 %v1284
        %1482 = vmatprep.subr.bf16.mxu0 0
        %1483 = vmatpush1.bf16.msra.mxu0 %v1287
        %1484 = vmatprep.subr.bf16.mxu0 0
        %1485 = vmatpush1.bf16.msra.mxu0 %v1290
        %1486 = vmatprep.subr.bf16.mxu0 0
        %1487 = vmatpush1.bf16.msra.mxu0 %v1293
        %1488 = vmatprep.subr.bf16.mxu0 0
        %1489 = vmatpush1.bf16.msra.mxu0 %v1296
        %1490 = vmatprep.mubr.bf16.mxu0 %v1058
        %1491 = vmatmul.mubr.bf16.gmra.mrb[0].mxu0 %v1057
        %v1492 = vpop.f32.mrb[0].mxu0
        %v1493 = vadd.f32 %v1085, %v1492
        %v1494 = vpop.f32.mrb[0].mxu0
        %v1495 = vpop.f32.mrb[0].mxu0
        %v1496 = vadd.f32 %v1085, %v1495
        %v1497 = vpop.f32.mrb[0].mxu0
        %1498 = vmatprep.mubr.bf16.mxu0 %v1060
        %1499 = vmatmul.mubr.bf16.gmra.mrb[0].mxu0 %v1059
        %v1500 = vpop.f32.mrb[0].mxu0
        %v1501 = vadd.f32 %v1085, %v1500
        %v1502 = vpop.f32.mrb[0].mxu0
        %v1503 = vpop.f32.mrb[0].mxu0
        %v1504 = vadd.f32 %v1085, %v1503
        %v1505 = vpop.f32.mrb[0].mxu0
        %1506 = vmatprep.mubr.bf16.mxu0 %v1062
        %1507 = vmatmul.mubr.bf16.gmra.mrb[0].mxu0 %v1061
        %v1508 = vpop.f32.mrb[0].mxu0
        %v1509 = vadd.f32 %v1085, %v1508
        %v1510 = vpop.f32.mrb[0].mxu0
        %v1511 = vpop.f32.mrb[0].mxu0
        %v1512 = vadd.f32 %v1085, %v1511
        %v1513 = vpop.f32.mrb[0].mxu0
        %1514 = vmatprep.mubr.bf16.mxu0 %v1064
        %1515 = vmatmul.mubr.bf16.gmra.mrb[0].mxu0 %v1063
        %v1516 = vpop.f32.mrb[0].mxu0
        %v1517 = vadd.f32 %v1085, %v1516
        %v1518 = vpop.f32.mrb[0].mxu0
        %v1519 = vpop.f32.mrb[0].mxu0
        %v1520 = vadd.f32 %v1085, %v1519
        %v1521 = vpop.f32.mrb[0].mxu0
        %1522 = vmatprep.mubr.bf16.mxu0 %v1066
        %1523 = vmatmul.mubr.bf16.gmra.mrb[0].mxu0 %v1065
        %v1524 = vpop.f32.mrb[0].mxu0
        %v1525 = vadd.f32 %v1085, %v1524
        %v1526 = vpop.f32.mrb[0].mxu0
        %v1527 = vpop.f32.mrb[0].mxu0
        %v1528 = vadd.f32 %v1085, %v1527
        %v1529 = vpop.f32.mrb[0].mxu0
        %1530 = vmatprep.mubr.bf16.mxu0 %v1068
        %1531 = vmatmul.mubr.bf16.gmra.mrb[0].mxu0 %v1067
        %v1532 = vpop.f32.mrb[0].mxu0
        %v1533 = vadd.f32 %v1085, %v1532
        %v1534 = vpop.f32.mrb[0].mxu0
        %v1535 = vpop.f32.mrb[0].mxu0
        %v1536 = vadd.f32 %v1085, %v1535
        %v1537 = vpop.f32.mrb[0].mxu0
        %1538 = vmatprep.mubr.bf16.mxu0 %v1070
        %1539 = vmatmul.mubr.bf16.gmra.mrb[0].mxu0 %v1069
        %v1540 = vpop.f32.mrb[0].mxu0
        %v1541 = vadd.f32 %v1085, %v1540
        %v1542 = vpop.f32.mrb[0].mxu0
        %v1543 = vpop.f32.mrb[0].mxu0
        %v1544 = vadd.f32 %v1085, %v1543
        %v1545 = vpop.f32.mrb[0].mxu0
        %1546 = vmatprep.mubr.bf16.mxu0 %v1072
        %1547 = vmatmul.mubr.bf16.gmra.mrb[0].mxu0 %v1071
        %v1548 = vpop.f32.mrb[0].mxu0
        %v1549 = vadd.f32 %v1085, %v1548
        %v1550 = vpop.f32.mrb[0].mxu0
        %v1551 = vpop.f32.mrb[0].mxu0
        %v1552 = vadd.f32 %v1085, %v1551
        %v1553 = vpop.f32.mrb[0].mxu0
        %1554 = vdwg.mxu0
        %vm1555 = vcmp.ge.f32.partialorder %v1380, 0.0
        %vm1556 = vcmp.ge.f32.partialorder %v1382, 0.0
        %vm1557 = vcmp.ge.f32.partialorder %v1493, 0.0
        %vm1558 = vcmp.ge.f32.partialorder %v1384, 0.0
        %vm1559 = vcmp.ge.f32.partialorder %v1386, 0.0
        %vm1560 = vcmp.ge.f32.partialorder %v1496, 0.0
        %vm1561 = vcmp.ge.f32.partialorder %v1390, 0.0
        %vm1562 = vcmp.ge.f32.partialorder %v1392, 0.0
        %vm1563 = vcmp.ge.f32.partialorder %v1501, 0.0
        %vm1564 = vcmp.ge.f32.partialorder %v1394, 0.0
        %vm1565 = vcmp.ge.f32.partialorder %v1396, 0.0
        %vm1566 = vcmp.ge.f32.partialorder %v1504, 0.0
        %vm1567 = vcmp.ge.f32.partialorder %v1400, 0.0
        %vm1568 = vcmp.ge.f32.partialorder %v1402, 0.0
        %vm1569 = vcmp.ge.f32.partialorder %v1509, 0.0
        %vm1570 = vcmp.ge.f32.partialorder %v1404, 0.0
        %vm1571 = vcmp.ge.f32.partialorder %v1406, 0.0
        %vm1572 = vcmp.ge.f32.partialorder %v1512, 0.0
        %vm1573 = vcmp.ge.f32.partialorder %v1410, 0.0
        %vm1574 = vcmp.ge.f32.partialorder %v1412, 0.0
        %vm1575 = vcmp.ge.f32.partialorder %v1517, 0.0
        %vm1576 = vcmp.ge.f32.partialorder %v1414, 0.0
        %vm1577 = vcmp.ge.f32.partialorder %v1416, 0.0
        %vm1578 = vcmp.ge.f32.partialorder %v1520, 0.0
        %vm1579 = vcmp.ge.f32.partialorder %v1420, 0.0
        %vm1580 = vcmp.ge.f32.partialorder %v1422, 0.0
        %vm1581 = vcmp.ge.f32.partialorder %v1525, 0.0
        %vm1582 = vcmp.ge.f32.partialorder %v1424, 0.0
        %vm1583 = vcmp.ge.f32.partialorder %v1426, 0.0
        %vm1584 = vcmp.ge.f32.partialorder %v1528, 0.0
        %vm1585 = vcmp.ge.f32.partialorder %v1430, 0.0
        %vm1586 = vcmp.ge.f32.partialorder %v1432, 0.0
        %vm1587 = vcmp.ge.f32.partialorder %v1533, 0.0
        %vm1588 = vcmp.ge.f32.partialorder %v1434, 0.0
        %vm1589 = vcmp.ge.f32.partialorder %v1436, 0.0
        %vm1590 = vcmp.ge.f32.partialorder %v1536, 0.0
        %vm1591 = vcmp.ge.f32.partialorder %v1440, 0.0
        %vm1592 = vcmp.ge.f32.partialorder %v1442, 0.0
        %vm1593 = vcmp.ge.f32.partialorder %v1541, 0.0
        %vm1594 = vcmp.ge.f32.partialorder %v1444, 0.0
        %vm1595 = vcmp.ge.f32.partialorder %v1446, 0.0
        %vm1596 = vcmp.ge.f32.partialorder %v1544, 0.0
        %vm1597 = vcmp.ge.f32.partialorder %v1450, 0.0
        %vm1598 = vcmp.ge.f32.partialorder %v1452, 0.0
        %vm1599 = vcmp.ge.f32.partialorder %v1549, 0.0
        %vm1600 = vcmp.ge.f32.partialorder %v1454, 0.0
        %vm1601 = vcmp.ge.f32.partialorder %v1456, 0.0
        %vm1602 = vcmp.ge.f32.partialorder %v1552, 0.0
        %v1603 = vstv %s232
        %v1604 = vmul.f32 %v1603, %v1380
        %v1605 = vmul.f32 %v1603, %v1382
        %v1606 = vmul.f32 %v1603, %v1493
        %v1607 = vmul.f32 %v1603, %v1384
        %v1608 = vmul.f32 %v1603, %v1386
        %v1609 = vmul.f32 %v1603, %v1496
        %v1610 = vmul.f32 %v1603, %v1390
        %v1611 = vmul.f32 %v1603, %v1392
        %v1612 = vmul.f32 %v1603, %v1501
        %v1613 = vmul.f32 %v1603, %v1394
        %v1614 = vmul.f32 %v1603, %v1396
        %v1615 = vmul.f32 %v1603, %v1504
        %v1616 = vmul.f32 %v1603, %v1400
        %v1617 = vmul.f32 %v1603, %v1402
        %v1618 = vmul.f32 %v1603, %v1509
        %v1619 = vmul.f32 %v1603, %v1404
        %v1620 = vmul.f32 %v1603, %v1406
        %v1621 = vmul.f32 %v1603, %v1512
        %v1622 = vmul.f32 %v1603, %v1410
        %v1623 = vmul.f32 %v1603, %v1412
        %v1624 = vmul.f32 %v1603, %v1517
        %v1625 = vmul.f32 %v1603, %v1414
        %v1626 = vmul.f32 %v1603, %v1416
        %v1627 = vmul.f32 %v1603, %v1520
        %v1628 = vmul.f32 %v1603, %v1420
        %v1629 = vmul.f32 %v1603, %v1422
        %v1630 = vmul.f32 %v1603, %v1525
        %v1631 = vmul.f32 %v1603, %v1424
        %v1632 = vmul.f32 %v1603, %v1426
        %v1633 = vmul.f32 %v1603, %v1528
        %v1634 = vmul.f32 %v1603, %v1430
        %v1635 = vmul.f32 %v1603, %v1432
        %v1636 = vmul.f32 %v1603, %v1533
        %v1637 = vmul.f32 %v1603, %v1434
        %v1638 = vmul.f32 %v1603, %v1436
        %v1639 = vmul.f32 %v1603, %v1536
        %v1640 = vmul.f32 %v1603, %v1440
        %v1641 = vmul.f32 %v1603, %v1442
        %v1642 = vmul.f32 %v1603, %v1541
        %v1643 = vmul.f32 %v1603, %v1444
        %v1644 = vmul.f32 %v1603, %v1446
        %v1645 = vmul.f32 %v1603, %v1544
        %v1646 = vmul.f32 %v1603, %v1450
        %v1647 = vmul.f32 %v1603, %v1452
        %v1648 = vmul.f32 %v1603, %v1549
        %v1649 = vmul.f32 %v1603, %v1454
        %v1650 = vmul.f32 %v1603, %v1456
        %v1651 = vmul.f32 %v1603, %v1552
        %v1652 = vsel %vm1555, %v1380, %v1604
        %v1653 = vsel %vm1556, %v1382, %v1605
        %v1654 = vsel %vm1557, %v1493, %v1606
        %v1655 = vsel %vm1558, %v1384, %v1607
        %v1656 = vsel %vm1559, %v1386, %v1608
        %v1657 = vsel %vm1560, %v1496, %v1609
        %v1658 = vsel %vm1561, %v1390, %v1610
        %v1659 = vsel %vm1562, %v1392, %v1611
        %v1660 = vsel %vm1563, %v1501, %v1612
        %v1661 = vsel %vm1564, %v1394, %v1613
        %v1662 = vsel %vm1565, %v1396, %v1614
        %v1663 = vsel %vm1566, %v1504, %v1615
        %v1664 = vsel %vm1567, %v1400, %v1616
        %v1665 = vsel %vm1568, %v1402, %v1617
        %v1666 = vsel %vm1569, %v1509, %v1618
        %v1667 = vsel %vm1570, %v1404, %v1619
        %v1668 = vsel %vm1571, %v1406, %v1620
        %v1669 = vsel %vm1572, %v1512, %v1621
        %v1670 = vsel %vm1573, %v1410, %v1622
        %v1671 = vsel %vm1574, %v1412, %v1623
        %v1672 = vsel %vm1575, %v1517, %v1624
        %v1673 = vsel %vm1576, %v1414, %v1625
        %v1674 = vsel %vm1577, %v1416, %v1626
        %v1675 = vsel %vm1578, %v1520, %v1627
        %v1676 = vsel %vm1579, %v1420, %v1628
        %v1677 = vsel %vm1580, %v1422, %v1629
        %v1678 = vsel %vm1581, %v1525, %v1630
        %v1679 = vsel %vm1582, %v1424, %v1631
        %v1680 = vsel %vm1583, %v1426, %v1632
        %v1681 = vsel %vm1584, %v1528, %v1633
        %v1682 = vsel %vm1585, %v1430, %v1634
        %v1683 = vsel %vm1586, %v1432, %v1635
        %v1684 = vsel %vm1587, %v1533, %v1636
        %v1685 = vsel %vm1588, %v1434, %v1637
        %v1686 = vsel %vm1589, %v1436, %v1638
        %v1687 = vsel %vm1590, %v1536, %v1639
        %v1688 = vsel %vm1591, %v1440, %v1640
        %v1689 = vsel %vm1592, %v1442, %v1641
        %v1690 = vsel %vm1593, %v1541, %v1642
        %v1691 = vsel %vm1594, %v1444, %v1643
        %v1692 = vsel %vm1595, %v1446, %v1644
        %v1693 = vsel %vm1596, %v1544, %v1645
        %v1694 = vsel %vm1597, %v1450, %v1646
        %v1695 = vsel %vm1598, %v1452, %v1647
        %v1696 = vsel %vm1599, %v1549, %v1648
        %v1697 = vsel %vm1600, %v1454, %v1649
        %v1698 = vsel %vm1601, %v1456, %v1650
        %v1699 = vsel %vm1602, %v1552, %v1651
        %v1700 = vld [vmem:[#allocation2 + $0x330] sm:$0xf]
        %v1701 = vld [vmem:[#allocation2 + $0x33c] sm:$0xf]
        %v1702 = vld [vmem:[#allocation2 + $0x348] sm:$0xf]
        %v1703 = vld [vmem:[#allocation2 + $0x354] sm:$0xf]
        %v1704 = vld [vmem:[#allocation2 + $0x360] sm:$0xf]
        %v1705 = vld [vmem:[#allocation2 + $0x36c] sm:$0xf]
        %v1706 = vld [vmem:[#allocation2 + $0x378] sm:$0xf]
        %v1707 = vld [vmem:[#allocation2 + $0x384] sm:$0xf]
        %v1708 = vld [vmem:[#allocation2 + $0x390] sm:$0xf]
        %v1709 = vld [vmem:[#allocation2 + $0x39c] sm:$0xf]
        %v1710 = vld [vmem:[#allocation2 + $0x3a8] sm:$0xf]
        %v1711 = vld [vmem:[#allocation2 + $0x3b4] sm:$0xf]
        %v1712 = vld [vmem:[#allocation2 + $0x3c0] sm:$0xf]
        %v1713 = vld [vmem:[#allocation2 + $0x3cc] sm:$0xf]
        %v1714 = vld [vmem:[#allocation2 + $0x3d8] sm:$0xf]
        %v1715 = vld [vmem:[#allocation2 + $0x3e4] sm:$0xf]
        %v1716 = vld [vmem:[#allocation2 + $0x3f0] sm:$0xf]
        %v1717 = vld [vmem:[#allocation2 + $0x3fc] sm:$0xf]
        %v1718 = vld [vmem:[#allocation2 + $0x408] sm:$0xf]
        %v1719 = vld [vmem:[#allocation2 + $0x414] sm:$0xf]
        %v1720 = vld [vmem:[#allocation2 + $0x420] sm:$0xf]
        %v1721 = vld [vmem:[#allocation2 + $0x42c] sm:$0xf]
        %v1722 = vld [vmem:[#allocation2 + $0x438] sm:$0xf]
        %v1723 = vld [vmem:[#allocation2 + $0x444] sm:$0xf]
        %v1724 = vld [vmem:[#allocation2 + $0x450] sm:$0xf]
        %v1725 = vld [vmem:[#allocation2 + $0x45c] sm:$0xf]
        %v1726 = vld [vmem:[#allocation2 + $0x468] sm:$0xf]
        %v1727 = vld [vmem:[#allocation2 + $0x474] sm:$0xf]
        %v1728 = vld [vmem:[#allocation2 + $0x480] sm:$0xf]
        %v1729 = vld [vmem:[#allocation2 + $0x48c] sm:$0xf]
        %v1730 = vld [vmem:[#allocation2 + $0x498] sm:$0xf]
        %v1731 = vld [vmem:[#allocation2 + $0x4a4] sm:$0xf]
        %v1732 = vld [vmem:[#allocation2 + $0x4b0] sm:$0xf]
        %v1733 = vld [vmem:[#allocation2 + $0x4bc] sm:$0xf]
        %v1734 = vld [vmem:[#allocation2 + $0x4c8] sm:$0xf]
        %v1735 = vld [vmem:[#allocation2 + $0x4d4] sm:$0xf]
        %v1736 = vld [vmem:[#allocation2 + $0x4e0] sm:$0xf]
        %v1737 = vld [vmem:[#allocation2 + $0x4ec] sm:$0xf]
        %v1738 = vld [vmem:[#allocation2 + $0x4f8] sm:$0xf]
        %v1739 = vld [vmem:[#allocation2 + $0x504] sm:$0xf]
        %v1740 = vld [vmem:[#allocation2 + $0x510] sm:$0xf]
        %v1741 = vld [vmem:[#allocation2 + $0x51c] sm:$0xf]
        %v1742 = vld [vmem:[#allocation2 + $0x528] sm:$0xf]
        %v1743 = vld [vmem:[#allocation2 + $0x534] sm:$0xf]
        %v1744 = vld [vmem:[#allocation2 + $0x540] sm:$0xf]
        %v1745 = vld [vmem:[#allocation2 + $0x54c] sm:$0xf]
        %v1746 = vld [vmem:[#allocation2 + $0x558] sm:$0xf]
        %v1747 = vld [vmem:[#allocation2 + $0x564] sm:$0xf]
        %v1748 = vld [vmem:[%s2 + $0x4] ss:$0 sm:$0xff]
        %v1749 = vpack.c.bf16 %v1655, %v1652
        %v1750 = vpack.c.bf16 %v1656, %v1653
        %v1751 = vpack.c.bf16 %v1657, %v1654
        %v1752 = vpack.c.bf16 %v1661, %v1658
        %v1753 = vpack.c.bf16 %v1662, %v1659
        %v1754 = vpack.c.bf16 %v1663, %v1660
        %v1755 = vpack.c.bf16 %v1667, %v1664
        %v1756 = vpack.c.bf16 %v1668, %v1665
        %v1757 = vpack.c.bf16 %v1669, %v1666
        %v1758 = vpack.c.bf16 %v1673, %v1670
        %v1759 = vpack.c.bf16 %v1674, %v1671
        %v1760 = vpack.c.bf16 %v1675, %v1672
        %v1761 = vpack.c.bf16 %v1679, %v1676
        %v1762 = vpack.c.bf16 %v1680, %v1677
        %v1763 = vpack.c.bf16 %v1681, %v1678
        %v1764 = vpack.c.bf16 %v1685, %v1682
        %v1765 = vpack.c.bf16 %v1686, %v1683
        %v1766 = vpack.c.bf16 %v1687, %v1684
        %v1767 = vpack.c.bf16 %v1691, %v1688
        %v1768 = vpack.c.bf16 %v1692, %v1689
        %v1769 = vpack.c.bf16 %v1693, %v1690
        %v1770 = vpack.c.bf16 %v1697, %v1694
        %v1771 = vpack.c.bf16 %v1698, %v1695
        %v1772 = vpack.c.bf16 %v1699, %v1696
        %v1821 = vunpack.c.l.b16 %v1700
        %v1822 = vunpack.c.l.b16 %v1701
        %v1823 = vunpack.c.l.b16 %v1702
        %v1824 = vunpack.c.l.b16 %v1703
        %v1825 = vunpack.c.l.b16 %v1704
        %v1826 = vunpack.c.l.b16 %v1705
        %v1827 = vunpack.c.l.b16 %v1706
        %v1828 = vunpack.c.l.b16 %v1707
        %v1829 = vunpack.c.l.b16 %v1708
        %v1830 = vunpack.c.l.b16 %v1709
        %v1831 = vunpack.c.l.b16 %v1710
        %v1832 = vunpack.c.l.b16 %v1711
        %v1833 = vunpack.c.l.b16 %v1712
        %v1834 = vunpack.c.l.b16 %v1713
        %v1835 = vunpack.c.l.b16 %v1714
        %v1836 = vunpack.c.l.b16 %v1715
        %v1837 = vunpack.c.l.b16 %v1716
        %v1838 = vunpack.c.l.b16 %v1717
        %v1839 = vunpack.c.l.b16 %v1718
        %v1840 = vunpack.c.l.b16 %v1719
        %v1841 = vunpack.c.l.b16 %v1720
        %v1842 = vunpack.c.l.b16 %v1721
        %v1843 = vunpack.c.l.b16 %v1722
        %v1844 = vunpack.c.l.b16 %v1723
        %v1845 = vunpack.c.l.b16 %v1724
        %v1846 = vunpack.c.l.b16 %v1725
        %v1847 = vunpack.c.l.b16 %v1726
        %v1848 = vunpack.c.l.b16 %v1727
        %v1849 = vunpack.c.l.b16 %v1728
        %v1850 = vunpack.c.l.b16 %v1729
        %v1851 = vunpack.c.l.b16 %v1730
        %v1852 = vunpack.c.l.b16 %v1731
        %v1853 = vunpack.c.l.b16 %v1732
        %v1854 = vunpack.c.l.b16 %v1733
        %v1855 = vunpack.c.l.b16 %v1734
        %v1856 = vunpack.c.l.b16 %v1735
        %v1857 = vunpack.c.l.b16 %v1736
        %v1858 = vunpack.c.l.b16 %v1737
        %v1859 = vunpack.c.l.b16 %v1738
        %v1860 = vunpack.c.l.b16 %v1739
        %v1861 = vunpack.c.l.b16 %v1740
        %v1862 = vunpack.c.l.b16 %v1741
        %v1863 = vunpack.c.l.b16 %v1742
        %v1864 = vunpack.c.l.b16 %v1743
        %v1865 = vunpack.c.l.b16 %v1744
        %v1866 = vunpack.c.l.b16 %v1745
        %v1867 = vunpack.c.l.b16 %v1746
        %v1868 = vunpack.c.l.b16 %v1747
        %v1869 = vpack.c.b16 %v1822, %v1821
        %v1870 = vpack.c.b16 %v1824, %v1823
        %v1871 = vpack.c.b16 %v1826, %v1825
        %v1872 = vpack.c.b16 %v1828, %v1827
        %v1873 = vpack.c.b16 %v1830, %v1829
        %v1874 = vpack.c.b16 %v1832, %v1831
        %v1875 = vpack.c.b16 %v1834, %v1833
        %v1876 = vpack.c.b16 %v1836, %v1835
        %v1877 = vpack.c.b16 %v1838, %v1837
        %v1878 = vpack.c.b16 %v1840, %v1839
        %v1879 = vpack.c.b16 %v1842, %v1841
        %v1880 = vpack.c.b16 %v1844, %v1843
        %v1881 = vpack.c.b16 %v1846, %v1845
        %v1882 = vpack.c.b16 %v1848, %v1847
        %v1883 = vpack.c.b16 %v1850, %v1849
        %v1884 = vpack.c.b16 %v1852, %v1851
        %v1885 = vpack.c.b16 %v1854, %v1853
        %v1886 = vpack.c.b16 %v1856, %v1855
        %v1887 = vpack.c.b16 %v1858, %v1857
        %v1888 = vpack.c.b16 %v1860, %v1859
        %v1889 = vpack.c.b16 %v1862, %v1861
        %v1890 = vpack.c.b16 %v1864, %v1863
        %v1891 = vpack.c.b16 %v1866, %v1865
        %v1892 = vpack.c.b16 %v1868, %v1867
        %1917 = vmatprep.subr.bf16.mxu0 0
        %1918 = vmatpush1.bf16.msra.mxu0 %v1869
        %1919 = vmatprep.subr.bf16.mxu0 0
        %1920 = vmatpush1.bf16.msra.mxu0 %v1870
        %1921 = vmatprep.subr.bf16.mxu0 0
        %1922 = vmatpush1.bf16.msra.mxu0 %v1871
        %1923 = vmatprep.subr.bf16.mxu0 0
        %1924 = vmatpush1.bf16.msra.mxu0 %v1872
        %1925 = vmatprep.subr.bf16.mxu0 0
        %1926 = vmatpush1.bf16.msra.mxu0 %v1873
        %1927 = vmatprep.subr.bf16.mxu0 0
        %1928 = vmatpush1.bf16.msra.mxu0 %v1874
        %1929 = vmatprep.subr.bf16.mxu0 0
        %1930 = vmatpush1.bf16.msra.mxu0 %v1875
        %1931 = vmatprep.subr.bf16.mxu0 0
        %1932 = vmatpush1.bf16.msra.mxu0 %v1876
        %1933 = vmatprep.subr.bf16.mxu0 0
        %1934 = vmatpush1.bf16.msra.mxu0 %v1877
        %1935 = vmatprep.subr.bf16.mxu0 0
        %1936 = vmatpush1.bf16.msra.mxu0 %v1878
        %1937 = vmatprep.subr.bf16.mxu0 0
        %1938 = vmatpush1.bf16.msra.mxu0 %v1879
        %1939 = vmatprep.subr.bf16.mxu0 0
        %1940 = vmatpush1.bf16.msra.mxu0 %v1880
        %1941 = vmatprep.subr.bf16.mxu0 0
        %1942 = vmatpush1.bf16.msra.mxu0 %v1881
        %1943 = vmatprep.subr.bf16.mxu0 0
        %1944 = vmatpush1.bf16.msra.mxu0 %v1882
        %1945 = vmatprep.subr.bf16.mxu0 0
        %1946 = vmatpush1.bf16.msra.mxu0 %v1883
        %1947 = vmatprep.subr.bf16.mxu0 0
        %1948 = vmatpush1.bf16.msra.mxu0 %v1884
        %1949 = vmatprep.mubr.bf16.mxu0 %v1750
        %1950 = vmatmul.mubr.bf16.gmra.mrb[0].mxu0 %v1749
        %v1951 = vpop.f32.mrb[0].mxu0
        %v1952 = vadd.f32 %v1748, %v1951
        %v1953 = vpop.f32.mrb[0].mxu0
        %v1954 = vpop.f32.mrb[0].mxu0
        %v1955 = vadd.f32 %v1748, %v1954
        %v1956 = vpop.f32.mrb[0].mxu0
        %1957 = vmatprep.mubr.bf16.mxu0 %v1753
        %1958 = vmatmul.mubr.bf16.gmra.mrb[0].mxu0 %v1752
        %v1959 = vpop.f32.mrb[0].mxu0
        %v1960 = vadd.f32 %v1748, %v1959
        %v1961 = vpop.f32.mrb[0].mxu0
        %v1962 = vpop.f32.mrb[0].mxu0
        %v1963 = vadd.f32 %v1748, %v1962
        %v1964 = vpop.f32.mrb[0].mxu0
        %1965 = vmatprep.mubr.bf16.mxu0 %v1756
        %1966 = vmatmul.mubr.bf16.gmra.mrb[0].mxu0 %v1755
        %v1967 = vpop.f32.mrb[0].mxu0
        %v1968 = vadd.f32 %v1748, %v1967
        %v1969 = vpop.f32.mrb[0].mxu0
        %v1970 = vpop.f32.mrb[0].mxu0
        %v1971 = vadd.f32 %v1748, %v1970
        %v1972 = vpop.f32.mrb[0].mxu0
        %1973 = vmatprep.mubr.bf16.mxu0 %v1759
        %1974 = vmatmul.mubr.bf16.gmra.mrb[0].mxu0 %v1758
        %v1975 = vpop.f32.mrb[0].mxu0
        %v1976 = vadd.f32 %v1748, %v1975
        %v1977 = vpop.f32.mrb[0].mxu0
        %v1978 = vpop.f32.mrb[0].mxu0
        %v1979 = vadd.f32 %v1748, %v1978
        %v1980 = vpop.f32.mrb[0].mxu0
        %1981 = vmatprep.mubr.bf16.mxu0 %v1762
        %1982 = vmatmul.mubr.bf16.gmra.mrb[0].mxu0 %v1761
        %v1983 = vpop.f32.mrb[0].mxu0
        %v1984 = vadd.f32 %v1748, %v1983
        %v1985 = vpop.f32.mrb[0].mxu0
        %v1986 = vpop.f32.mrb[0].mxu0
        %v1987 = vadd.f32 %v1748, %v1986
        %v1988 = vpop.f32.mrb[0].mxu0
        %1989 = vmatprep.mubr.bf16.mxu0 %v1765
        %1990 = vmatmul.mubr.bf16.gmra.mrb[0].mxu0 %v1764
        %v1991 = vpop.f32.mrb[0].mxu0
        %v1992 = vadd.f32 %v1748, %v1991
        %v1993 = vpop.f32.mrb[0].mxu0
        %v1994 = vpop.f32.mrb[0].mxu0
        %v1995 = vadd.f32 %v1748, %v1994
        %v1996 = vpop.f32.mrb[0].mxu0
        %1997 = vmatprep.mubr.bf16.mxu0 %v1768
        %1998 = vmatmul.mubr.bf16.gmra.mrb[0].mxu0 %v1767
        %v1999 = vpop.f32.mrb[0].mxu0
        %v2000 = vadd.f32 %v1748, %v1999
        %v2001 = vpop.f32.mrb[0].mxu0
        %v2002 = vpop.f32.mrb[0].mxu0
        %v2003 = vadd.f32 %v1748, %v2002
        %v2004 = vpop.f32.mrb[0].mxu0
        %2005 = vmatprep.mubr.bf16.mxu0 %v1771
        %2006 = vmatmul.mubr.bf16.gmra.mrb[0].mxu0 %v1770
        %v2007 = vpop.f32.mrb[0].mxu0
        %v2008 = vadd.f32 %v1748, %v2007
        %v2009 = vpop.f32.mrb[0].mxu0
        %v2010 = vpop.f32.mrb[0].mxu0
        %v2011 = vadd.f32 %v1748, %v2010
        %v2012 = vpop.f32.mrb[0].mxu0
        %2013 = vdwg.mxu0
        %2014 = vmatprep.subr.bf16.mxu0 0
        %2015 = vmatpush1.bf16.msra.mxu0 %v1885
        %2016 = vmatprep.subr.bf16.mxu0 0
        %2017 = vmatpush1.bf16.msra.mxu0 %v1886
        %2018 = vmatprep.subr.bf16.mxu0 0
        %2019 = vmatpush1.bf16.msra.mxu0 %v1887
        %2020 = vmatprep.subr.bf16.mxu0 0
        %2021 = vmatpush1.bf16.msra.mxu0 %v1888
        %2022 = vmatprep.subr.bf16.mxu0 0
        %2023 = vmatpush1.bf16.msra.mxu0 %v1889
        %2024 = vmatprep.subr.bf16.mxu0 0
        %2025 = vmatpush1.bf16.msra.mxu0 %v1890
        %2026 = vmatprep.subr.bf16.mxu0 0
        %2027 = vmatpush1.bf16.msra.mxu0 %v1891
        %2028 = vmatprep.subr.bf16.mxu0 0
        %2029 = vmatpush1.bf16.msra.mxu0 %v1892
        %2030 = vmatprep.subr.bf16.mxu0 0
        %2031 = vmatpush1.bf16.msra.mxu0 0
        %2032 = vmatprep.subr.bf16.mxu0 0
        %2033 = vmatpush1.bf16.msra.mxu0 0
        %2034 = vmatprep.subr.bf16.mxu0 0
        %2035 = vmatpush1.bf16.msra.mxu0 0
        %2036 = vmatprep.subr.bf16.mxu0 0
        %2037 = vmatpush1.bf16.msra.mxu0 0
        %2038 = vmatprep.subr.bf16.mxu0 0
        %2039 = vmatpush1.bf16.msra.mxu0 0
        %2040 = vmatprep.subr.bf16.mxu0 0
        %2041 = vmatpush1.bf16.msra.mxu0 0
        %2042 = vmatprep.subr.bf16.mxu0 0
        %2043 = vmatpush1.bf16.msra.mxu0 0
        %2044 = vmatprep.subr.bf16.mxu0 0
        %2045 = vmatpush1.bf16.msra.mxu0 0
        %2046 = vmatprep.mubr.bf16.mxu0 0
        %2047 = vmatmul.mubr.bf16.gmra.mrb[0].mxu0 %v1751
        %v2048 = vpop.f32.mrb[0].mxu0
        %v2049 = vadd.f32 %v1952, %v2048
        %v2050 = vpop.f32.mrb[0].mxu0
        %v2051 = vpop.f32.mrb[0].mxu0
        %v2052 = vadd.f32 %v1955, %v2051
        %v2053 = vpop.f32.mrb[0].mxu0
        %2054 = vmatprep.mubr.bf16.mxu0 0
        %2055 = vmatmul.mubr.bf16.gmra.mrb[0].mxu0 %v1754
        %v2056 = vpop.f32.mrb[0].mxu0
        %v2057 = vadd.f32 %v1960, %v2056
        %v2058 = vpop.f32.mrb[0].mxu0
        %v2059 = vpop.f32.mrb[0].mxu0
        %v2060 = vadd.f32 %v1963, %v2059
        %v2061 = vpop.f32.mrb[0].mxu0
        %2062 = vmatprep.mubr.bf16.mxu0 0
        %2063 = vmatmul.mubr.bf16.gmra.mrb[0].mxu0 %v1757
        %v2064 = vpop.f32.mrb[0].mxu0
        %v2065 = vadd.f32 %v1968, %v2064
        %v2066 = vpop.f32.mrb[0].mxu0
        %v2067 = vpop.f32.mrb[0].mxu0
        %v2068 = vadd.f32 %v1971, %v2067
        %v2069 = vpop.f32.mrb[0].mxu0
        %2070 = vmatprep.mubr.bf16.mxu0 0
        %2071 = vmatmul.mubr.bf16.gmra.mrb[0].mxu0 %v1760
        %v2072 = vpop.f32.mrb[0].mxu0
        %v2073 = vadd.f32 %v1976, %v2072
        %v2074 = vpop.f32.mrb[0].mxu0
        %v2075 = vpop.f32.mrb[0].mxu0
        %v2076 = vadd.f32 %v1979, %v2075
        %v2077 = vpop.f32.mrb[0].mxu0
        %2078 = vmatprep.mubr.bf16.mxu0 0
        %2079 = vmatmul.mubr.bf16.gmra.mrb[0].mxu0 %v1763
        %v2080 = vpop.f32.mrb[0].mxu0
        %v2081 = vadd.f32 %v1984, %v2080
        %v2082 = vpop.f32.mrb[0].mxu0
        %v2083 = vpop.f32.mrb[0].mxu0
        %v2084 = vadd.f32 %v1987, %v2083
        %v2085 = vpop.f32.mrb[0].mxu0
        %2086 = vmatprep.mubr.bf16.mxu0 0
        %2087 = vmatmul.mubr.bf16.gmra.mrb[0].mxu0 %v1766
        %v2088 = vpop.f32.mrb[0].mxu0
        %v2089 = vadd.f32 %v1992, %v2088
        %v2090 = vpop.f32.mrb[0].mxu0
        %v2091 = vpop.f32.mrb[0].mxu0
        %v2092 = vadd.f32 %v1995, %v2091
        %v2093 = vpop.f32.mrb[0].mxu0
        %2094 = vmatprep.mubr.bf16.mxu0 0
        %2095 = vmatmul.mubr.bf16.gmra.mrb[0].mxu0 %v1769
        %v2096 = vpop.f32.mrb[0].mxu0
        %v2097 = vadd.f32 %v2000, %v2096
        %v2098 = vpop.f32.mrb[0].mxu0
        %v2099 = vpop.f32.mrb[0].mxu0
        %v2100 = vadd.f32 %v2003, %v2099
        %v2101 = vpop.f32.mrb[0].mxu0
        %2102 = vmatprep.mubr.bf16.mxu0 0
        %2103 = vmatmul.mubr.bf16.gmra.mrb[0].mxu0 %v1772
        %v2104 = vpop.f32.mrb[0].mxu0
        %v2105 = vadd.f32 %v2008, %v2104
        %v2106 = vpop.f32.mrb[0].mxu0
        %v2107 = vpop.f32.mrb[0].mxu0
        %v2108 = vadd.f32 %v2011, %v2107
        %v2109 = vpop.f32.mrb[0].mxu0
        %2110 = vdwg.mxu0
        %v2111 = vlaneseq
        %v2112 = vand.u32 %v2111, 127
        %vm2113 = vcmp.lt.s32.totalorder %v2112, 10
        %v2114 = vsel %vm2113, %v2049, -1e+30
        %v2115 = vsel %vm2113, %v2052, -1e+30
        %v2116 = vsel %vm2113, %v2057, -1e+30
        %v2117 = vsel %vm2113, %v2060, -1e+30
        %v2118 = vsel %vm2113, %v2065, -1e+30
        %v2119 = vsel %vm2113, %v2068, -1e+30
        %v2120 = vsel %vm2113, %v2073, -1e+30
        %v2121 = vsel %vm2113, %v2076, -1e+30
        %v2122 = vsel %vm2113, %v2081, -1e+30
        %v2123 = vsel %vm2113, %v2084, -1e+30
        %v2124 = vsel %vm2113, %v2089, -1e+30
        %v2125 = vsel %vm2113, %v2092, -1e+30
        %v2126 = vsel %vm2113, %v2097, -1e+30
        %v2127 = vsel %vm2113, %v2100, -1e+30
        %v2128 = vsel %vm2113, %v2105, -1e+30
        %v2129 = vsel %vm2113, %v2108, -1e+30
        %2130 = vmax.xlane.f32.xlu0 %v2114
        %v2131 = vpop.xlane.xlu0 %2130
        %2132 = vmax.xlane.f32.xlu0 %v2115
        %v2133 = vpop.xlane.xlu0 %2132
        %2134 = vmax.xlane.f32.xlu0 %v2116
        %v2135 = vpop.xlane.xlu0 %2134
        %2136 = vmax.xlane.f32.xlu0 %v2117
        %v2137 = vpop.xlane.xlu0 %2136
        %2138 = vmax.xlane.f32.xlu0 %v2118
        %v2139 = vpop.xlane.xlu0 %2138
        %2140 = vmax.xlane.f32.xlu0 %v2119
        %v2141 = vpop.xlane.xlu0 %2140
        %2142 = vmax.xlane.f32.xlu0 %v2120
        %v2143 = vpop.xlane.xlu0 %2142
        %2144 = vmax.xlane.f32.xlu0 %v2121
        %v2145 = vpop.xlane.xlu0 %2144
        %2146 = vmax.xlane.f32.xlu0 %v2122
        %v2147 = vpop.xlane.xlu0 %2146
        %2148 = vmax.xlane.f32.xlu0 %v2123
        %v2149 = vpop.xlane.xlu0 %2148
        %2150 = vmax.xlane.f32.xlu0 %v2124
        %v2151 = vpop.xlane.xlu0 %2150
        %2152 = vmax.xlane.f32.xlu0 %v2125
        %v2153 = vpop.xlane.xlu0 %2152
        %2154 = vmax.xlane.f32.xlu0 %v2126
        %v2155 = vpop.xlane.xlu0 %2154
        %2156 = vmax.xlane.f32.xlu0 %v2127
        %v2157 = vpop.xlane.xlu0 %2156
        %2158 = vmax.xlane.f32.xlu0 %v2128
        %v2159 = vpop.xlane.xlu0 %2158
        %2160 = vmax.xlane.f32.xlu0 %v2129
        %v2161 = vpop.xlane.xlu0 %2160
        %v2162 = vsub.f32 %v2114, %v2131
        %v2163 = vsub.f32 %v2115, %v2133
        %v2164 = vsub.f32 %v2116, %v2135
        %v2165 = vsub.f32 %v2117, %v2137
        %v2166 = vsub.f32 %v2118, %v2139
        %v2167 = vsub.f32 %v2119, %v2141
        %v2168 = vsub.f32 %v2120, %v2143
        %v2169 = vsub.f32 %v2121, %v2145
        %v2170 = vsub.f32 %v2122, %v2147
        %v2171 = vsub.f32 %v2123, %v2149
        %v2172 = vsub.f32 %v2124, %v2151
        %v2173 = vsub.f32 %v2125, %v2153
        %v2174 = vsub.f32 %v2126, %v2155
        %v2175 = vsub.f32 %v2127, %v2157
        %v2176 = vsub.f32 %v2128, %v2159
        %v2177 = vsub.f32 %v2129, %v2161
        %v2178 = vmul.f32 %v2162, 1.442695
        %v2179 = vpow.pop %v2178
        %v2180 = vmul.f32 %v2163, 1.442695
        %v2181 = vpow.pop %v2180
        %v2182 = vmul.f32 %v2164, 1.442695
        %v2183 = vpow.pop %v2182
        %v2184 = vmul.f32 %v2165, 1.442695
        %v2185 = vpow.pop %v2184
        %v2186 = vmul.f32 %v2166, 1.442695
        %v2187 = vpow.pop %v2186
        %v2188 = vmul.f32 %v2167, 1.442695
        %v2189 = vpow.pop %v2188
        %v2190 = vmul.f32 %v2168, 1.442695
        %v2191 = vpow.pop %v2190
        %v2192 = vmul.f32 %v2169, 1.442695
        %v2193 = vpow.pop %v2192
        %v2194 = vmul.f32 %v2170, 1.442695
        %v2195 = vpow.pop %v2194
        %v2196 = vmul.f32 %v2171, 1.442695
        %v2197 = vpow.pop %v2196
        %v2198 = vmul.f32 %v2172, 1.442695
        %v2199 = vpow.pop %v2198
        %v2200 = vmul.f32 %v2173, 1.442695
        %v2201 = vpow.pop %v2200
        %v2202 = vmul.f32 %v2174, 1.442695
        %v2203 = vpow.pop %v2202
        %v2204 = vmul.f32 %v2175, 1.442695
        %v2205 = vpow.pop %v2204
        %v2206 = vmul.f32 %v2176, 1.442695
        %v2207 = vpow.pop %v2206
        %v2208 = vmul.f32 %v2177, 1.442695
        %v2209 = vpow.pop %v2208
        %2210 = vadd.xlane.f32.xlu0 %v2179
        %v2211 = vpop.xlane.xlu0 %2210
        %2212 = vadd.xlane.f32.xlu0 %v2181
        %v2213 = vpop.xlane.xlu0 %2212
        %2214 = vadd.xlane.f32.xlu0 %v2183
        %v2215 = vpop.xlane.xlu0 %2214
        %2216 = vadd.xlane.f32.xlu0 %v2185
        %v2217 = vpop.xlane.xlu0 %2216
        %2218 = vadd.xlane.f32.xlu0 %v2187
        %v2219 = vpop.xlane.xlu0 %2218
        %2220 = vadd.xlane.f32.xlu0 %v2189
        %v2221 = vpop.xlane.xlu0 %2220
        %2222 = vadd.xlane.f32.xlu0 %v2191
        %v2223 = vpop.xlane.xlu0 %2222
        %2224 = vadd.xlane.f32.xlu0 %v2193
        %v2225 = vpop.xlane.xlu0 %2224
        %2226 = vadd.xlane.f32.xlu0 %v2195
        %v2227 = vpop.xlane.xlu0 %2226
        %2228 = vadd.xlane.f32.xlu0 %v2197
        %v2229 = vpop.xlane.xlu0 %2228
        %2230 = vadd.xlane.f32.xlu0 %v2199
        %v2231 = vpop.xlane.xlu0 %2230
        %2232 = vadd.xlane.f32.xlu0 %v2201
        %v2233 = vpop.xlane.xlu0 %2232
        %2234 = vadd.xlane.f32.xlu0 %v2203
        %v2235 = vpop.xlane.xlu0 %2234
        %2236 = vadd.xlane.f32.xlu0 %v2205
        %v2237 = vpop.xlane.xlu0 %2236
        %2238 = vadd.xlane.f32.xlu0 %v2207
        %v2239 = vpop.xlane.xlu0 %2238
        %2240 = vadd.xlane.f32.xlu0 %v2209
        %v2241 = vpop.xlane.xlu0 %2240
        %v2242 = vrcp.pop %v2211
        %v2243 = vrcp.pop %v2213
        %v2244 = vrcp.pop %v2215
        %v2245 = vrcp.pop %v2217
        %v2246 = vrcp.pop %v2219
        %v2247 = vrcp.pop %v2221
        %v2248 = vrcp.pop %v2223
        %v2249 = vrcp.pop %v2225
        %v2250 = vrcp.pop %v2227
        %v2251 = vrcp.pop %v2229
        %v2252 = vrcp.pop %v2231
        %v2253 = vrcp.pop %v2233
        %v2254 = vrcp.pop %v2235
        %v2255 = vrcp.pop %v2237
        %v2256 = vrcp.pop %v2239
        %v2257 = vrcp.pop %v2241
        %v2258 = vmul.f32 %v2211, %v2242
        %v2259 = vmul.f32 %v2213, %v2243
        %v2260 = vmul.f32 %v2215, %v2244
        %v2261 = vmul.f32 %v2217, %v2245
        %v2262 = vmul.f32 %v2219, %v2246
        %v2263 = vmul.f32 %v2221, %v2247
        %v2264 = vmul.f32 %v2223, %v2248
        %v2265 = vmul.f32 %v2225, %v2249
        %v2266 = vmul.f32 %v2227, %v2250
        %v2267 = vmul.f32 %v2229, %v2251
        %v2268 = vmul.f32 %v2231, %v2252
        %v2269 = vmul.f32 %v2233, %v2253
        %v2270 = vmul.f32 %v2235, %v2254
        %v2271 = vmul.f32 %v2237, %v2255
        %v2272 = vmul.f32 %v2239, %v2256
        %v2273 = vmul.f32 %v2241, %v2257
        %v2274 = vsub.f32 2.0, %v2258
        %v2275 = vsub.f32 2.0, %v2259
        %v2276 = vsub.f32 2.0, %v2260
        %v2277 = vsub.f32 2.0, %v2261
        %v2278 = vsub.f32 2.0, %v2262
        %v2279 = vsub.f32 2.0, %v2263
        %v2280 = vsub.f32 2.0, %v2264
        %v2281 = vsub.f32 2.0, %v2265
        %v2282 = vsub.f32 2.0, %v2266
        %v2283 = vsub.f32 2.0, %v2267
        %v2284 = vsub.f32 2.0, %v2268
        %v2285 = vsub.f32 2.0, %v2269
        %v2286 = vsub.f32 2.0, %v2270
        %v2287 = vsub.f32 2.0, %v2271
        %v2288 = vsub.f32 2.0, %v2272
        %v2289 = vsub.f32 2.0, %v2273
        %v2290 = vmul.f32 %v2242, %v2274
        %v2291 = vmul.f32 %v2243, %v2275
        %v2292 = vmul.f32 %v2244, %v2276
        %v2293 = vmul.f32 %v2245, %v2277
        %v2294 = vmul.f32 %v2246, %v2278
        %v2295 = vmul.f32 %v2247, %v2279
        %v2296 = vmul.f32 %v2248, %v2280
        %v2297 = vmul.f32 %v2249, %v2281
        %v2298 = vmul.f32 %v2250, %v2282
        %v2299 = vmul.f32 %v2251, %v2283
        %v2300 = vmul.f32 %v2252, %v2284
        %v2301 = vmul.f32 %v2253, %v2285
        %v2302 = vmul.f32 %v2254, %v2286
        %v2303 = vmul.f32 %v2255, %v2287
        %v2304 = vmul.f32 %v2256, %v2288
        %v2305 = vmul.f32 %v2257, %v2289
        %v2306 = vmul.f32 %v2179, %v2290
        %v2307 = vmul.f32 %v2181, %v2291
        %v2308 = vmul.f32 %v2183, %v2292
        %v2309 = vmul.f32 %v2185, %v2293
        %v2310 = vmul.f32 %v2187, %v2294
        %v2311 = vmul.f32 %v2189, %v2295
        %v2312 = vmul.f32 %v2191, %v2296
        %v2313 = vmul.f32 %v2193, %v2297
        %v2314 = vmul.f32 %v2195, %v2298
        %v2315 = vmul.f32 %v2197, %v2299
        %v2316 = vmul.f32 %v2199, %v2300
        %v2317 = vmul.f32 %v2201, %v2301
        %v2318 = vmul.f32 %v2203, %v2302
        %v2319 = vmul.f32 %v2205, %v2303
        %v2320 = vmul.f32 %v2207, %v2304
        %v2321 = vmul.f32 %v2209, %v2305
        %2322 = vst [vmem:[%s220] sm:$0xff] %v2306
        %2323 = vst [vmem:[%s220 + $0x8] sm:$0xff] %v2307
        %2324 = vst [vmem:[%s220 + $0x10] sm:$0xff] %v2308
        %2325 = vst [vmem:[%s220 + $0x18] sm:$0xff] %v2309
        %2326 = vst [vmem:[%s220 + $0x20] sm:$0xff] %v2310
        %2327 = vst [vmem:[%s220 + $0x28] sm:$0xff] %v2311
        %2328 = vst [vmem:[%s220 + $0x30] sm:$0xff] %v2312
        %2329 = vst [vmem:[%s220 + $0x38] sm:$0xff] %v2313
        %2330 = vst [vmem:[%s220 + $0x40] sm:$0xff] %v2314
        %2331 = vst [vmem:[%s220 + $0x48] sm:$0xff] %v2315
        %2332 = vst [vmem:[%s220 + $0x50] sm:$0xff] %v2316
        %2333 = vst [vmem:[%s220 + $0x58] sm:$0xff] %v2317
        %2334 = vst [vmem:[%s220 + $0x60] sm:$0xff] %v2318
        %2335 = vst [vmem:[%s220 + $0x68] sm:$0xff] %v2319
        %2336 = vst [vmem:[%s220 + $0x70] sm:$0xff] %v2320
        %2337 = vst [vmem:[%s220 + $0x78] sm:$0xff] %v2321
        %s2338 = sand.u32 %s117, 1
        %s2339 = scalar_lea.sflag [#allocation4], %s2338
        %s2340 = sand.u32 %s117, 1
        %s2341 = smul.addr %s2340, 128
        %s2342 = scalar_lea.vmem [#allocation7], %s2341
        // Predicated region
        $region45: #{tpu_custom_call.1} parent=35 // pred_check
          %p2343 = pneg %p127
        $region46: #{tpu_custom_call.1} parent=35 // pred_check_branch
          %2345 = sbr.rel (%p2343) target = $region48
        $region47: #{tpu_custom_call.1} parent=35 // pred_region
          %s2346 = smul.u32 16, %s20
          %s2348 = ssub.s32 2048, 2048
          %2349 = vsyncadd %s2339, %s2348
          %s2350 = smul.addr %s2346, 128
          %s2351 = scalar_lea.hbm %s4, %s2350
          %s2352 = sshll.u32 %s2342, 4
          %s2353 = int_to_ptr.vmem [resolvable:$true] %s2352
          %2358 = dma.vmem_to_hbm [thread:$0]  %s2353, 2048, %s2351, %s2339, 128, 128, 8
        $region48: #{tpu_custom_call.1} parent=35 // pred_fallthru
          _
      $region36: #{tpu_custom_call.1} parent=5 // pred_fallthru
        _
      %p2359 = scmp.le.s32.totalorder 2, %s15
      // Predicated region
      $region49: #{tpu_custom_call.1} parent=5 // pred_check
        %p2360 = pneg %p2359
      $region50: #{tpu_custom_call.1} parent=5 // pred_check_branch
        %2362 = sbr.rel (%p2360) target = $region52
      $region51: #{tpu_custom_call.1} parent=5 // pred_region
        %s2363 = ssub.s32 %s15, 2
        // Predicated region
        $region53: #{tpu_custom_call.1} parent=51 // pred_check
          %p2364 = pneg %p133
        $region54: #{tpu_custom_call.1} parent=51 // pred_check_branch
          %2366 = sbr.rel (%p2364) target = $region56
        $region55: #{tpu_custom_call.1} parent=51 // pred_region
          %s2367 = sand.u32 %s118, 1
          %s2368 = scalar_lea.sflag [#allocation4], %s2367
          %s2369 = sand.u32 %s118, 1
          %s2370 = smul.addr %s2369, 128
          %s2371 = scalar_lea.vmem [#allocation7], %s2370
          %2372 = dma.done %s2368, 2048
        $region56: #{tpu_custom_call.1} parent=51 // pred_fallthru
          _
      $region52: #{tpu_custom_call.1} parent=5 // pred_fallthru
        _
    $region6: #{tpu_custom_call.1} parent=1 // loop_footer
      %s19 = sadd.s32 1, %s15
    $region7: #{tpu_custom_call.1} parent=1 // loop_footer_branch
      %14 = sbr.rel target = $region3
    $region8: #{tpu_custom_call.1} parent=1 // loop_exit
      _
    %2373 = vsyncpa [#allocation3], 1
    %s2374 = scalar_lea.sflag [#allocation3], 1
    %2375 = vsyncpa %s2374, 1
    %2376 = vsyncpa [#allocation4], 1
    %s2377 = scalar_lea.sflag [#allocation4], 1
    %2378 = vsyncpa %s2377, 1
    %2379 = vsyncpa [#allocation5], 1
    %s2380 = scalar_lea.sflag [#allocation5], 1
    %2381 = vsyncpa %s2380, 1

</llo_original>
